<compile_context>
chip_gen: v7x
topology: tpu7x:2x2x1
jax: 0.10.0
libtpu: 0.0.40
codegen_flags: <defaults>
</compile_context>

<pallas_src>
import functools

import jax
import jax.numpy as jnp
from jax.experimental import pallas as pl
from jax.experimental.pallas import tpu as pltpu


# --------------------------- fused LSTM + decoder -----------------------------

def _fused_rnn_kernel(emb2d_ref,      # (S*BP, ninp)  f32  embedded inputs (batch-padded)
                      h0_ref,         # (L, BP, H)    f32
                      c0_ref,         # (L, BP, H)    f32
                      wih0T_ref,      # (ninp, 4H)    f32  layer-0 W_ih^T  [i|f|o|g]
                      wihT_rest_ref,  # (max(L-1,1), H, 4H) f32  W_ih^T layers 1..L-1
                      whhT_ref,       # (L, H, 4H)    f32  W_hh^T per layer
                      b_ref,          # (L, 1, 4H)    f32  b_ih + b_hh per layer
                      decwT_ref,      # (H, VP)       f32  decoder weight^T (vocab padded)
                      decb_ref,       # (1, VP)       f32  decoder bias (vocab padded)
                      decoded_ref,    # (S*BP, VP)    f32  out (lane-dense, VP % 128 == 0)
                      hn_ref,         # (L, BP, H)    f32  out
                      cn_ref,         # (L, BP, H)    f32  out
                      gin_sc,         # VMEM (S*BP, 4H)  precomputed gate inputs
                      hseq_sc,        # VMEM (S*BP, H)   current layer's hidden seq
                      *, S, BP, H, L):
    for l in range(L):
        b_l = b_ref[l]        # (1, 4H)   loop-invariant, loaded once per layer
        whh_T = whhT_ref[l]   # (H, 4H)   loop-invariant, loaded once per layer

        # Hoisted input projection for the whole sequence: one big MXU matmul.
        if l == 0:
            gin_sc[...] = (
                jnp.dot(emb2d_ref[...], wih0T_ref[...],
                        preferred_element_type=jnp.float32) + b_l)
        else:
            gin_sc[...] = (
                jnp.dot(hseq_sc[...], wihT_rest_ref[l - 1],
                        preferred_element_type=jnp.float32) + b_l)

        h = h0_ref[l]          # (BP, H) carried in registers across the unroll
        c = c0_ref[l]

        # Sequential recurrence; S is tiny & static so a full Python unroll is
        # fine here.  TODO(synk): switch to lax.fori_loop(unroll=4..8) for
        # production S to cap vreg pressure.
        for t in range(S):
            # t*BP is a multiple of 8 -> sublane-aligned (8, 4H) load.
            gates = gin_sc[pl.ds(t * BP, BP), :] + jnp.dot(
                h, whh_T, preferred_element_type=jnp.float32)     # (BP, 4H)
            # Gate columns pre-reordered to [i | f | o | g]:
            #   one sigmoid over 3H lanes, one tanh over H lanes.
            sig = jax.nn.sigmoid(gates[:, 0:3 * H])
            g_g = jnp.tanh(gates[:, 3 * H:4 * H])
            i_g = sig[:, 0 * H:1 * H]
            f_g = sig[:, 1 * H:2 * H]
            o_g = sig[:, 2 * H:3 * H]
            c = f_g * c + i_g * g_g
            h = o_g * jnp.tanh(c)
            hseq_sc[pl.ds(t * BP, BP), :] = h   # aligned (8, H) store

        # TODO(synk): inter-layer dropout omitted (eval-mode identity).
        hn_ref[l] = h          # written exactly once per layer
        cn_ref[l] = c

    # Fused decoder: (S*BP, H) @ (H, VP) + b; hidden sequence never left VMEM,
    # VP is a multiple of 128 -> unmasked lane-dense stores.
    decoded_ref[...] = (
        jnp.dot(hseq_sc[...], decwT_ref[...],
                preferred_element_type=jnp.float32) + decb_ref[...])


def demo_rnn_forward(tokens, hidden, params):
    """Forward pass of DemoRNNModel (rnn_type='LSTM', dropout in eval mode).

    tokens: (S, B) int32
    hidden: (h0, c0), each (nlayers, B, nhid) f32
    returns: decoded (S, B, ntoken), (h_n, c_n)
    """
    h0_all, c0_all = hidden
    S, B = tokens.shape
    L, _, H = h0_all.shape
    ninp = params["enc_w"].shape[1]
    V = params["ntoken"]
    VP = params["decwT"].shape[1]          # vocab padded to a multiple of 128
    BP = 8 * pl.cdiv(B, 8)                 # batch padded to f32 sublane tile

    # encoder (embedding gather) + dropout(eval) -- glue in plain JAX.
    emb = jnp.take(params["enc_w"], tokens, axis=0)          # (S, B, ninp)
    emb = jnp.pad(emb, ((0, 0), (0, BP - B), (0, 0)))
    emb2d = emb.reshape(S * BP, ninp)

    h0p = jnp.pad(h0_all, ((0, 0), (0, BP - B), (0, 0)))
    c0p = jnp.pad(c0_all, ((0, 0), (0, BP - B), (0, 0)))

    kernel = functools.partial(_fused_rnn_kernel, S=S, BP=BP, H=H, L=L)

    decoded2d, h_n, c_n = pl.pallas_call(
        kernel,
        out_shape=(
            jax.ShapeDtypeStruct((S * BP, VP), jnp.float32),
            jax.ShapeDtypeStruct((L, BP, H), jnp.float32),
            jax.ShapeDtypeStruct((L, BP, H), jnp.float32),
        ),
        scratch_shapes=[
            pltpu.VMEM((S * BP, 4 * H), jnp.float32),   # gate inputs
            pltpu.VMEM((S * BP, H), jnp.float32),       # hidden sequence
        ],
    )(emb2d, h0p, c0p,
      params["wih0T"], params["wihT_rest"], params["whhT"], params["b"],
      params["decwT"], params["decb"])

    decoded = decoded2d.reshape(S, BP, VP)[:, :B, :V]
    return decoded, (h_n[:, :B], c_n[:, :B])


# ------------------------------ parameter setup -------------------------------

def _reorder_gate_cols(wT, H):
    """PyTorch gate order [i|f|g|o] -> kernel order [i|f|o|g] (last axis)."""
    return jnp.concatenate(
        [wT[..., 0:2 * H], wT[..., 3 * H:4 * H], wT[..., 2 * H:3 * H]], axis=-1)


def init_params(key, ntoken, ninp, nhid, nlayers):
    """Initializes like the PyTorch module and pre-packs everything the kernel
    needs (transposes, stacks, gate reorder, bias fusion, vocab padding) so the
    forward pass does no per-call weight reshuffling."""
    initrange = 0.1
    keys = jax.random.split(key, 2 + 4 * nlayers)
    H = nhid
    VP = 128 * ((ntoken + 127) // 128)     # lane-dense decoder output width

    enc_w = jax.random.uniform(keys[0], (ntoken, ninp), jnp.float32,
                               -initrange, initrange)
    dec_w = jax.random.uniform(keys[1], (ntoken, nhid), jnp.float32,
                               -initrange, initrange)
    dec_b = jnp.zeros((ntoken,), jnp.float32)

    stdv = 1.0 / jnp.sqrt(nhid)
    w_ih, w_hh, b_ih, b_hh = [], [], [], []
    for l in range(nlayers):
        in_dim = ninp if l == 0 else nhid
        k = keys[2 + 4 * l: 2 + 4 * (l + 1)]
        w_ih.append(jax.random.uniform(k[0], (4 * H, in_dim), jnp.float32, -stdv, stdv))
        w_hh.append(jax.random.uniform(k[1], (4 * H, H), jnp.float32, -stdv, stdv))
        b_ih.append(jax.random.uniform(k[2], (4 * H,), jnp.float32, -stdv, stdv))
        b_hh.append(jax.random.uniform(k[3], (4 * H,), jnp.float32, -stdv, stdv))

    # ---- pre-packed kernel views (done ONCE here, not per forward call) ----
    wih0T = _reorder_gate_cols(w_ih[0].T, H)                          # (ninp, 4H)
    if nlayers > 1:
        wihT_rest = jnp.stack([_reorder_gate_cols(w.T, H) for w in w_ih[1:]])
    else:
        wihT_rest = jnp.zeros((1, H, 4 * H), jnp.float32)             # unused
    whhT = jnp.stack([_reorder_gate_cols(w.T, H) for w in w_hh])      # (L, H, 4H)
    b_all = jnp.stack([_reorder_gate_cols((bi + bh).reshape(1, 4 * H), H)
                       for bi, bh in zip(b_ih, b_hh)])                # (L, 1, 4H)
    decwT = jnp.pad(dec_w.T, ((0, 0), (0, VP - ntoken)))              # (H, VP)
    decb = jnp.pad(dec_b, (0, VP - ntoken)).reshape(1, VP)            # (1, VP)

    return {
        "ntoken": ntoken,
        "enc_w": enc_w,
        "wih0T": wih0T, "wihT_rest": wihT_rest, "whhT": whhT, "b": b_all,
        "decwT": decwT, "decb": decb,
        # raw weights kept only for the pure-JAX reference check below
        "_raw": {"w_ih": w_ih, "w_hh": w_hh, "b_ih": b_ih, "b_hh": b_hh,
                 "dec_w": dec_w, "dec_b": dec_b},
    }


# --------------------------- pure-JAX reference -------------------------------

def _reference_forward(tokens, hidden, params):
    raw = params["_raw"]
    h0_all, c0_all = hidden
    S, B = tokens.shape
    L, _, H = h0_all.shape
    emb = jnp.take(params["enc_w"], tokens, axis=0)           # (S, B, ninp)
    hp = jnp.float32
    x = emb
    h_n, c_n = [], []
    for l in range(L):
        w_ih, w_hh = raw["w_ih"][l], raw["w_hh"][l]
        b = (raw["b_ih"][l] + raw["b_hh"][l]).astype(hp)

        def step(carry, x_t):
            h, c = carry
            gates = (x_t @ w_ih.T + h @ w_hh.T + b)
            i = jax.nn.sigmoid(gates[:, 0 * H:1 * H])
            f = jax.nn.sigmoid(gates[:, 1 * H:2 * H])
            g = jnp.tanh(gates[:, 2 * H:3 * H])
            o = jax.nn.sigmoid(gates[:, 3 * H:4 * H])
            c = f * c + i * g
            h = o * jnp.tanh(c)
            return (h, c), h

        (h_l, c_l), x = jax.lax.scan(step, (h0_all[l], c0_all[l]), x)
        h_n.append(h_l)
        c_n.append(c_l)
    dec = x.reshape(S * B, H) @ raw["dec_w"].T + raw["dec_b"]
    return dec.reshape(S, B, -1), (jnp.stack(h_n), jnp.stack(c_n))


if __name__ == "__main__":
    # Small shapes consistent with the module's forward:
    #   rnn_type='LSTM', ntoken=64, ninp=16, nhid=32, nlayers=2, seq=8, batch=2
    ntoken, ninp, nhid, nlayers = 64, 16, 32, 2
    seq_len, batch = 8, 2

    key = jax.random.PRNGKey(0)
    k_param, k_tok = jax.random.split(key)
    params = init_params(k_param, ntoken, ninp, nhid, nlayers)

    tokens = jax.random.randint(k_tok, (seq_len, batch), 0, ntoken,
                                dtype=jnp.int32)
    # init_hidden1 equivalent for LSTM: zeros (nlayers, batch, nhid) x2
    hidden = (jnp.zeros((nlayers, batch, nhid), jnp.float32),
              jnp.zeros((nlayers, batch, nhid), jnp.float32))

    decoded, (h_n, c_n) = demo_rnn_forward(tokens, hidden, params)
    jax.block_until_ready((decoded, h_n, c_n))

    assert decoded.shape == (seq_len, batch, ntoken)
    assert h_n.shape == (nlayers, batch, nhid)
    assert c_n.shape == (nlayers, batch, nhid)

    # correctness vs. pure-JAX reference (loose tolerance: MXU matmul rounding)
    ref_dec, (ref_h, ref_c) = _reference_forward(tokens, hidden, params)
    assert jnp.allclose(decoded, ref_dec, atol=3e-2, rtol=3e-2)
    assert jnp.allclose(h_n, ref_h, atol=3e-2, rtol=3e-2)
    assert jnp.allclose(c_n, ref_c, atol=3e-2, rtol=3e-2)

    print("KERNEL_OK")
</pallas_src>

<mosaic_0001>
module attributes {stable_mosaic.version = 11 : i64} {
  func.func @_fused_rnn_kernel(%arg0: memref<64x16xf32, #tpu.memory_space<vmem>>, %arg1: memref<2x8x32xf32, #tpu.memory_space<vmem>>, %arg2: memref<2x8x32xf32, #tpu.memory_space<vmem>>, %arg3: memref<16x128xf32, #tpu.memory_space<vmem>>, %arg4: memref<1x32x128xf32, #tpu.memory_space<vmem>>, %arg5: memref<2x32x128xf32, #tpu.memory_space<vmem>>, %arg6: memref<2x1x128xf32, #tpu.memory_space<vmem>>, %arg7: memref<32x128xf32, #tpu.memory_space<vmem>>, %arg8: memref<1x128xf32, #tpu.memory_space<vmem>>, %arg9: memref<64x128xf32, #tpu.memory_space<vmem>>, %arg10: memref<2x8x32xf32, #tpu.memory_space<vmem>>, %arg11: memref<2x8x32xf32, #tpu.memory_space<vmem>>, %arg12: memref<64x128xf32, #tpu.memory_space<vmem>>, %arg13: memref<64x32xf32, #tpu.memory_space<vmem>>) attributes {dimension_semantics = [], scalar_prefetch = 0 : i64, scratch_operands = 2 : i64, tpu.core_type = #tpu.core_type<tc>} {
    %c0 = arith.constant 0 : index
    %c0_0 = arith.constant 0 : index
    %c0_1 = arith.constant 0 : index
    %0 = vector.load %arg6[%c0, %c0_0, %c0_1] : memref<2x1x128xf32, #tpu.memory_space<vmem>>, vector<1x1x128xf32>
    %1 = vector.shape_cast %0 : vector<1x1x128xf32> to vector<1x128xf32>
    %c0_2 = arith.constant 0 : index
    %c0_3 = arith.constant 0 : index
    %c0_4 = arith.constant 0 : index
    %2 = vector.load %arg5[%c0_2, %c0_3, %c0_4] : memref<2x32x128xf32, #tpu.memory_space<vmem>>, vector<1x32x128xf32>
    %3 = vector.shape_cast %2 : vector<1x32x128xf32> to vector<32x128xf32>
    %c0_5 = arith.constant 0 : index
    %c0_6 = arith.constant 0 : index
    %4 = vector.load %arg0[%c0_5, %c0_6] : memref<64x16xf32, #tpu.memory_space<vmem>>, vector<64x16xf32>
    %c0_7 = arith.constant 0 : index
    %c0_8 = arith.constant 0 : index
    %5 = vector.load %arg3[%c0_7, %c0_8] : memref<16x128xf32, #tpu.memory_space<vmem>>, vector<16x128xf32>
    %cst = arith.constant dense<0.000000e+00> : vector<64x128xf32>
    %6 = tpu.matmul %4, %5, %cst {dimension_numbers = #tpu.dot_dimension_numbers<[1], [0], [0], [1], [0, 0, 1, 1], [], []>} : vector<64x16xf32>, vector<16x128xf32>, vector<64x128xf32> -> vector<64x128xf32>
    %7 = vector.broadcast %1 : vector<1x128xf32> to vector<64x128xf32>
    %8 = arith.addf %6, %7 : vector<64x128xf32>
    %c0_9 = arith.constant 0 : index
    %c0_10 = arith.constant 0 : index
    %9 = vector.load %arg12[%c0_9, %c0_10] : memref<64x128xf32, #tpu.memory_space<vmem>>, vector<64x128xf32>
    tpu.vector_store %arg12[%c0_9, %c0_10], %8 {strides = array<i32>} : memref<64x128xf32, #tpu.memory_space<vmem>>, vector<64x128xf32>,
    %c0_11 = arith.constant 0 : index
    %c0_12 = arith.constant 0 : index
    %c0_13 = arith.constant 0 : index
    %10 = vector.load %arg1[%c0_11, %c0_12, %c0_13] : memref<2x8x32xf32, #tpu.memory_space<vmem>>, vector<1x8x32xf32>
    %11 = vector.shape_cast %10 : vector<1x8x32xf32> to vector<8x32xf32>
    %c0_14 = arith.constant 0 : index
    %c0_15 = arith.constant 0 : index
    %c0_16 = arith.constant 0 : index
    %12 = vector.load %arg2[%c0_14, %c0_15, %c0_16] : memref<2x8x32xf32, #tpu.memory_space<vmem>>, vector<1x8x32xf32>
    %13 = vector.shape_cast %12 : vector<1x8x32xf32> to vector<8x32xf32>
    %c0_17 = arith.constant 0 : index
    %c0_18 = arith.constant 0 : index
    %14 = vector.load %arg12[%c0_17, %c0_18] : memref<64x128xf32, #tpu.memory_space<vmem>>, vector<8x128xf32>
    %cst_19 = arith.constant dense<0.000000e+00> : vector<8x128xf32>
    %15 = tpu.matmul %11, %3, %cst_19 {dimension_numbers = #tpu.dot_dimension_numbers<[1], [0], [0], [1], [0, 0, 1, 1], [], []>} : vector<8x32xf32>, vector<32x128xf32>, vector<8x128xf32> -> vector<8x128xf32>
    %16 = arith.addf %14, %15 : vector<8x128xf32>
    %17 = vector.extract_strided_slice %16 {offsets = [0, 0], sizes = [8, 96], strides = [1, 1]} : vector<8x128xf32> to vector<8x96xf32>
    %18 = arith.negf %17 : vector<8x96xf32>
    %19 = math.exp %18 : vector<8x96xf32>
    %cst_20 = arith.constant 1.000000e+00 : f32
    %20 = vector.broadcast %cst_20 : f32 to vector<8x96xf32>
    %21 = arith.addf %20, %19 : vector<8x96xf32>
    %22 = arith.divf %20, %21 : vector<8x96xf32>
    %23 = vector.extract_strided_slice %16 {offsets = [0, 96], sizes = [8, 32], strides = [1, 1]} : vector<8x128xf32> to vector<8x32xf32>
    %24 = math.tanh %23 : vector<8x32xf32>
    %25 = vector.extract_strided_slice %22 {offsets = [0, 0], sizes = [8, 32], strides = [1, 1]} : vector<8x96xf32> to vector<8x32xf32>
    %26 = vector.extract_strided_slice %22 {offsets = [0, 32], sizes = [8, 32], strides = [1, 1]} : vector<8x96xf32> to vector<8x32xf32>
    %27 = vector.extract_strided_slice %22 {offsets = [0, 64], sizes = [8, 32], strides = [1, 1]} : vector<8x96xf32> to vector<8x32xf32>
    %28 = arith.mulf %26, %13 : vector<8x32xf32>
    %29 = arith.mulf %25, %24 : vector<8x32xf32>
    %30 = arith.addf %28, %29 : vector<8x32xf32>
    %31 = math.tanh %30 : vector<8x32xf32>
    %32 = arith.mulf %27, %31 : vector<8x32xf32>
    %c0_21 = arith.constant 0 : index
    %c0_22 = arith.constant 0 : index
    %33 = vector.load %arg13[%c0_21, %c0_22] : memref<64x32xf32, #tpu.memory_space<vmem>>, vector<8x32xf32>
    tpu.vector_store %arg13[%c0_21, %c0_22], %32 {strides = array<i32>} : memref<64x32xf32, #tpu.memory_space<vmem>>, vector<8x32xf32>,
    %c8 = arith.constant 8 : index
    %c0_23 = arith.constant 0 : index
    %34 = vector.load %arg12[%c8, %c0_23] : memref<64x128xf32, #tpu.memory_space<vmem>>, vector<8x128xf32>
    %cst_24 = arith.constant dense<0.000000e+00> : vector<8x128xf32>
    %35 = tpu.matmul %32, %3, %cst_24 {dimension_numbers = #tpu.dot_dimension_numbers<[1], [0], [0], [1], [0, 0, 1, 1], [], []>} : vector<8x32xf32>, vector<32x128xf32>, vector<8x128xf32> -> vector<8x128xf32>
    %36 = arith.addf %34, %35 : vector<8x128xf32>
    %37 = vector.extract_strided_slice %36 {offsets = [0, 0], sizes = [8, 96], strides = [1, 1]} : vector<8x128xf32> to vector<8x96xf32>
    %38 = arith.negf %37 : vector<8x96xf32>
    %39 = math.exp %38 : vector<8x96xf32>
    %cst_25 = arith.constant 1.000000e+00 : f32
    %40 = vector.broadcast %cst_25 : f32 to vector<8x96xf32>
    %41 = arith.addf %40, %39 : vector<8x96xf32>
    %42 = arith.divf %40, %41 : vector<8x96xf32>
    %43 = vector.extract_strided_slice %36 {offsets = [0, 96], sizes = [8, 32], strides = [1, 1]} : vector<8x128xf32> to vector<8x32xf32>
    %44 = math.tanh %43 : vector<8x32xf32>
    %45 = vector.extract_strided_slice %42 {offsets = [0, 0], sizes = [8, 32], strides = [1, 1]} : vector<8x96xf32> to vector<8x32xf32>
    %46 = vector.extract_strided_slice %42 {offsets = [0, 32], sizes = [8, 32], strides = [1, 1]} : vector<8x96xf32> to vector<8x32xf32>
    %47 = vector.extract_strided_slice %42 {offsets = [0, 64], sizes = [8, 32], strides = [1, 1]} : vector<8x96xf32> to vector<8x32xf32>
    %48 = arith.mulf %46, %30 : vector<8x32xf32>
    %49 = arith.mulf %45, %44 : vector<8x32xf32>
    %50 = arith.addf %48, %49 : vector<8x32xf32>
    %51 = math.tanh %50 : vector<8x32xf32>
    %52 = arith.mulf %47, %51 : vector<8x32xf32>
    %c8_26 = arith.constant 8 : index
    %c0_27 = arith.constant 0 : index
    %53 = vector.load %arg13[%c8_26, %c0_27] : memref<64x32xf32, #tpu.memory_space<vmem>>, vector<8x32xf32>
    tpu.vector_store %arg13[%c8_26, %c0_27], %52 {strides = array<i32>} : memref<64x32xf32, #tpu.memory_space<vmem>>, vector<8x32xf32>,
    %c16 = arith.constant 16 : index
    %c0_28 = arith.constant 0 : index
    %54 = vector.load %arg12[%c16, %c0_28] : memref<64x128xf32, #tpu.memory_space<vmem>>, vector<8x128xf32>
    %cst_29 = arith.constant dense<0.000000e+00> : vector<8x128xf32>
    %55 = tpu.matmul %52, %3, %cst_29 {dimension_numbers = #tpu.dot_dimension_numbers<[1], [0], [0], [1], [0, 0, 1, 1], [], []>} : vector<8x32xf32>, vector<32x128xf32>, vector<8x128xf32> -> vector<8x128xf32>
    %56 = arith.addf %54, %55 : vector<8x128xf32>
    %57 = vector.extract_strided_slice %56 {offsets = [0, 0], sizes = [8, 96], strides = [1, 1]} : vector<8x128xf32> to vector<8x96xf32>
    %58 = arith.negf %57 : vector<8x96xf32>
    %59 = math.exp %58 : vector<8x96xf32>
    %cst_30 = arith.constant 1.000000e+00 : f32
    %60 = vector.broadcast %cst_30 : f32 to vector<8x96xf32>
    %61 = arith.addf %60, %59 : vector<8x96xf32>
    %62 = arith.divf %60, %61 : vector<8x96xf32>
    %63 = vector.extract_strided_slice %56 {offsets = [0, 96], sizes = [8, 32], strides = [1, 1]} : vector<8x128xf32> to vector<8x32xf32>
    %64 = math.tanh %63 : vector<8x32xf32>
    %65 = vector.extract_strided_slice %62 {offsets = [0, 0], sizes = [8, 32], strides = [1, 1]} : vector<8x96xf32> to vector<8x32xf32>
    %66 = vector.extract_strided_slice %62 {offsets = [0, 32], sizes = [8, 32], strides = [1, 1]} : vector<8x96xf32> to vector<8x32xf32>
    %67 = vector.extract_strided_slice %62 {offsets = [0, 64], sizes = [8, 32], strides = [1, 1]} : vector<8x96xf32> to vector<8x32xf32>
    %68 = arith.mulf %66, %50 : vector<8x32xf32>
    %69 = arith.mulf %65, %64 : vector<8x32xf32>
    %70 = arith.addf %68, %69 : vector<8x32xf32>
    %71 = math.tanh %70 : vector<8x32xf32>
    %72 = arith.mulf %67, %71 : vector<8x32xf32>
    %c16_31 = arith.constant 16 : index
    %c0_32 = arith.constant 0 : index
    %73 = vector.load %arg13[%c16_31, %c0_32] : memref<64x32xf32, #tpu.memory_space<vmem>>, vector<8x32xf32>
    tpu.vector_store %arg13[%c16_31, %c0_32], %72 {strides = array<i32>} : memref<64x32xf32, #tpu.memory_space<vmem>>, vector<8x32xf32>,
    %c24 = arith.constant 24 : index
    %c0_33 = arith.constant 0 : index
    %74 = vector.load %arg12[%c24, %c0_33] : memref<64x128xf32, #tpu.memory_space<vmem>>, vector<8x128xf32>
    %cst_34 = arith.constant dense<0.000000e+00> : vector<8x128xf32>
    %75 = tpu.matmul %72, %3, %cst_34 {dimension_numbers = #tpu.dot_dimension_numbers<[1], [0], [0], [1], [0, 0, 1, 1], [], []>} : vector<8x32xf32>, vector<32x128xf32>, vector<8x128xf32> -> vector<8x128xf32>
    %76 = arith.addf %74, %75 : vector<8x128xf32>
    %77 = vector.extract_strided_slice %76 {offsets = [0, 0], sizes = [8, 96], strides = [1, 1]} : vector<8x128xf32> to vector<8x96xf32>
    %78 = arith.negf %77 : vector<8x96xf32>
    %79 = math.exp %78 : vector<8x96xf32>
    %cst_35 = arith.constant 1.000000e+00 : f32
    %80 = vector.broadcast %cst_35 : f32 to vector<8x96xf32>
    %81 = arith.addf %80, %79 : vector<8x96xf32>
    %82 = arith.divf %80, %81 : vector<8x96xf32>
    %83 = vector.extract_strided_slice %76 {offsets = [0, 96], sizes = [8, 32], strides = [1, 1]} : vector<8x128xf32> to vector<8x32xf32>
    %84 = math.tanh %83 : vector<8x32xf32>
    %85 = vector.extract_strided_slice %82 {offsets = [0, 0], sizes = [8, 32], strides = [1, 1]} : vector<8x96xf32> to vector<8x32xf32>
    %86 = vector.extract_strided_slice %82 {offsets = [0, 32], sizes = [8, 32], strides = [1, 1]} : vector<8x96xf32> to vector<8x32xf32>
    %87 = vector.extract_strided_slice %82 {offsets = [0, 64], sizes = [8, 32], strides = [1, 1]} : vector<8x96xf32> to vector<8x32xf32>
    %88 = arith.mulf %86, %70 : vector<8x32xf32>
    %89 = arith.mulf %85, %84 : vector<8x32xf32>
    %90 = arith.addf %88, %89 : vector<8x32xf32>
    %91 = math.tanh %90 : vector<8x32xf32>
    %92 = arith.mulf %87, %91 : vector<8x32xf32>
    %c24_36 = arith.constant 24 : index
    %c0_37 = arith.constant 0 : index
    %93 = vector.load %arg13[%c24_36, %c0_37] : memref<64x32xf32, #tpu.memory_space<vmem>>, vector<8x32xf32>
    tpu.vector_store %arg13[%c24_36, %c0_37], %92 {strides = array<i32>} : memref<64x32xf32, #tpu.memory_space<vmem>>, vector<8x32xf32>,
    %c32 = arith.constant 32 : index
    %c0_38 = arith.constant 0 : index
    %94 = vector.load %arg12[%c32, %c0_38] : memref<64x128xf32, #tpu.memory_space<vmem>>, vector<8x128xf32>
    %cst_39 = arith.constant dense<0.000000e+00> : vector<8x128xf32>
    %95 = tpu.matmul %92, %3, %cst_39 {dimension_numbers = #tpu.dot_dimension_numbers<[1], [0], [0], [1], [0, 0, 1, 1], [], []>} : vector<8x32xf32>, vector<32x128xf32>, vector<8x128xf32> -> vector<8x128xf32>
    %96 = arith.addf %94, %95 : vector<8x128xf32>
    %97 = vector.extract_strided_slice %96 {offsets = [0, 0], sizes = [8, 96], strides = [1, 1]} : vector<8x128xf32> to vector<8x96xf32>
    %98 = arith.negf %97 : vector<8x96xf32>
    %99 = math.exp %98 : vector<8x96xf32>
    %cst_40 = arith.constant 1.000000e+00 : f32
    %100 = vector.broadcast %cst_40 : f32 to vector<8x96xf32>
    %101 = arith.addf %100, %99 : vector<8x96xf32>
    %102 = arith.divf %100, %101 : vector<8x96xf32>
    %103 = vector.extract_strided_slice %96 {offsets = [0, 96], sizes = [8, 32], strides = [1, 1]} : vector<8x128xf32> to vector<8x32xf32>
    %104 = math.tanh %103 : vector<8x32xf32>
    %105 = vector.extract_strided_slice %102 {offsets = [0, 0], sizes = [8, 32], strides = [1, 1]} : vector<8x96xf32> to vector<8x32xf32>
    %106 = vector.extract_strided_slice %102 {offsets = [0, 32], sizes = [8, 32], strides = [1, 1]} : vector<8x96xf32> to vector<8x32xf32>
    %107 = vector.extract_strided_slice %102 {offsets = [0, 64], sizes = [8, 32], strides = [1, 1]} : vector<8x96xf32> to vector<8x32xf32>
    %108 = arith.mulf %106, %90 : vector<8x32xf32>
    %109 = arith.mulf %105, %104 : vector<8x32xf32>
    %110 = arith.addf %108, %109 : vector<8x32xf32>
    %111 = math.tanh %110 : vector<8x32xf32>
    %112 = arith.mulf %107, %111 : vector<8x32xf32>
    %c32_41 = arith.constant 32 : index
    %c0_42 = arith.constant 0 : index
    %113 = vector.load %arg13[%c32_41, %c0_42] : memref<64x32xf32, #tpu.memory_space<vmem>>, vector<8x32xf32>
    tpu.vector_store %arg13[%c32_41, %c0_42], %112 {strides = array<i32>} : memref<64x32xf32, #tpu.memory_space<vmem>>, vector<8x32xf32>,
    %c40 = arith.constant 40 : index
    %c0_43 = arith.constant 0 : index
    %114 = vector.load %arg12[%c40, %c0_43] : memref<64x128xf32, #tpu.memory_space<vmem>>, vector<8x128xf32>
    %cst_44 = arith.constant dense<0.000000e+00> : vector<8x128xf32>
    %115 = tpu.matmul %112, %3, %cst_44 {dimension_numbers = #tpu.dot_dimension_numbers<[1], [0], [0], [1], [0, 0, 1, 1], [], []>} : vector<8x32xf32>, vector<32x128xf32>, vector<8x128xf32> -> vector<8x128xf32>
    %116 = arith.addf %114, %115 : vector<8x128xf32>
    %117 = vector.extract_strided_slice %116 {offsets = [0, 0], sizes = [8, 96], strides = [1, 1]} : vector<8x128xf32> to vector<8x96xf32>
    %118 = arith.negf %117 : vector<8x96xf32>
    %119 = math.exp %118 : vector<8x96xf32>
    %cst_45 = arith.constant 1.000000e+00 : f32
    %120 = vector.broadcast %cst_45 : f32 to vector<8x96xf32>
    %121 = arith.addf %120, %119 : vector<8x96xf32>
    %122 = arith.divf %120, %121 : vector<8x96xf32>
    %123 = vector.extract_strided_slice %116 {offsets = [0, 96], sizes = [8, 32], strides = [1, 1]} : vector<8x128xf32> to vector<8x32xf32>
    %124 = math.tanh %123 : vector<8x32xf32>
    %125 = vector.extract_strided_slice %122 {offsets = [0, 0], sizes = [8, 32], strides = [1, 1]} : vector<8x96xf32> to vector<8x32xf32>
    %126 = vector.extract_strided_slice %122 {offsets = [0, 32], sizes = [8, 32], strides = [1, 1]} : vector<8x96xf32> to vector<8x32xf32>
    %127 = vector.extract_strided_slice %122 {offsets = [0, 64], sizes = [8, 32], strides = [1, 1]} : vector<8x96xf32> to vector<8x32xf32>
    %128 = arith.mulf %126, %110 : vector<8x32xf32>
    %129 = arith.mulf %125, %124 : vector<8x32xf32>
    %130 = arith.addf %128, %129 : vector<8x32xf32>
    %131 = math.tanh %130 : vector<8x32xf32>
    %132 = arith.mulf %127, %131 : vector<8x32xf32>
    %c40_46 = arith.constant 40 : index
    %c0_47 = arith.constant 0 : index
    %133 = vector.load %arg13[%c40_46, %c0_47] : memref<64x32xf32, #tpu.memory_space<vmem>>, vector<8x32xf32>
    tpu.vector_store %arg13[%c40_46, %c0_47], %132 {strides = array<i32>} : memref<64x32xf32, #tpu.memory_space<vmem>>, vector<8x32xf32>,
    %c48 = arith.constant 48 : index
    %c0_48 = arith.constant 0 : index
    %134 = vector.load %arg12[%c48, %c0_48] : memref<64x128xf32, #tpu.memory_space<vmem>>, vector<8x128xf32>
    %cst_49 = arith.constant dense<0.000000e+00> : vector<8x128xf32>
    %135 = tpu.matmul %132, %3, %cst_49 {dimension_numbers = #tpu.dot_dimension_numbers<[1], [0], [0], [1], [0, 0, 1, 1], [], []>} : vector<8x32xf32>, vector<32x128xf32>, vector<8x128xf32> -> vector<8x128xf32>
    %136 = arith.addf %134, %135 : vector<8x128xf32>
    %137 = vector.extract_strided_slice %136 {offsets = [0, 0], sizes = [8, 96], strides = [1, 1]} : vector<8x128xf32> to vector<8x96xf32>
    %138 = arith.negf %137 : vector<8x96xf32>
    %139 = math.exp %138 : vector<8x96xf32>
    %cst_50 = arith.constant 1.000000e+00 : f32
    %140 = vector.broadcast %cst_50 : f32 to vector<8x96xf32>
    %141 = arith.addf %140, %139 : vector<8x96xf32>
    %142 = arith.divf %140, %141 : vector<8x96xf32>
    %143 = vector.extract_strided_slice %136 {offsets = [0, 96], sizes = [8, 32], strides = [1, 1]} : vector<8x128xf32> to vector<8x32xf32>
    %144 = math.tanh %143 : vector<8x32xf32>
    %145 = vector.extract_strided_slice %142 {offsets = [0, 0], sizes = [8, 32], strides = [1, 1]} : vector<8x96xf32> to vector<8x32xf32>
    %146 = vector.extract_strided_slice %142 {offsets = [0, 32], sizes = [8, 32], strides = [1, 1]} : vector<8x96xf32> to vector<8x32xf32>
    %147 = vector.extract_strided_slice %142 {offsets = [0, 64], sizes = [8, 32], strides = [1, 1]} : vector<8x96xf32> to vector<8x32xf32>
    %148 = arith.mulf %146, %130 : vector<8x32xf32>
    %149 = arith.mulf %145, %144 : vector<8x32xf32>
    %150 = arith.addf %148, %149 : vector<8x32xf32>
    %151 = math.tanh %150 : vector<8x32xf32>
    %152 = arith.mulf %147, %151 : vector<8x32xf32>
    %c48_51 = arith.constant 48 : index
    %c0_52 = arith.constant 0 : index
    %153 = vector.load %arg13[%c48_51, %c0_52] : memref<64x32xf32, #tpu.memory_space<vmem>>, vector<8x32xf32>
    tpu.vector_store %arg13[%c48_51, %c0_52], %152 {strides = array<i32>} : memref<64x32xf32, #tpu.memory_space<vmem>>, vector<8x32xf32>,
    %c56 = arith.constant 56 : index
    %c0_53 = arith.constant 0 : index
    %154 = vector.load %arg12[%c56, %c0_53] : memref<64x128xf32, #tpu.memory_space<vmem>>, vector<8x128xf32>
    %cst_54 = arith.constant dense<0.000000e+00> : vector<8x128xf32>
    %155 = tpu.matmul %152, %3, %cst_54 {dimension_numbers = #tpu.dot_dimension_numbers<[1], [0], [0], [1], [0, 0, 1, 1], [], []>} : vector<8x32xf32>, vector<32x128xf32>, vector<8x128xf32> -> vector<8x128xf32>
    %156 = arith.addf %154, %155 : vector<8x128xf32>
    %157 = vector.extract_strided_slice %156 {offsets = [0, 0], sizes = [8, 96], strides = [1, 1]} : vector<8x128xf32> to vector<8x96xf32>
    %158 = arith.negf %157 : vector<8x96xf32>
    %159 = math.exp %158 : vector<8x96xf32>
    %cst_55 = arith.constant 1.000000e+00 : f32
    %160 = vector.broadcast %cst_55 : f32 to vector<8x96xf32>
    %161 = arith.addf %160, %159 : vector<8x96xf32>
    %162 = arith.divf %160, %161 : vector<8x96xf32>
    %163 = vector.extract_strided_slice %156 {offsets = [0, 96], sizes = [8, 32], strides = [1, 1]} : vector<8x128xf32> to vector<8x32xf32>
    %164 = math.tanh %163 : vector<8x32xf32>
    %165 = vector.extract_strided_slice %162 {offsets = [0, 0], sizes = [8, 32], strides = [1, 1]} : vector<8x96xf32> to vector<8x32xf32>
    %166 = vector.extract_strided_slice %162 {offsets = [0, 32], sizes = [8, 32], strides = [1, 1]} : vector<8x96xf32> to vector<8x32xf32>
    %167 = vector.extract_strided_slice %162 {offsets = [0, 64], sizes = [8, 32], strides = [1, 1]} : vector<8x96xf32> to vector<8x32xf32>
    %168 = arith.mulf %166, %150 : vector<8x32xf32>
    %169 = arith.mulf %165, %164 : vector<8x32xf32>
    %170 = arith.addf %168, %169 : vector<8x32xf32>
    %171 = math.tanh %170 : vector<8x32xf32>
    %172 = arith.mulf %167, %171 : vector<8x32xf32>
    %c56_56 = arith.constant 56 : index
    %c0_57 = arith.constant 0 : index
    %173 = vector.load %arg13[%c56_56, %c0_57] : memref<64x32xf32, #tpu.memory_space<vmem>>, vector<8x32xf32>
    tpu.vector_store %arg13[%c56_56, %c0_57], %172 {strides = array<i32>} : memref<64x32xf32, #tpu.memory_space<vmem>>, vector<8x32xf32>,
    %c0_58 = arith.constant 0 : index
    %c0_59 = arith.constant 0 : index
    %c0_60 = arith.constant 0 : index
    %174 = vector.load %arg10[%c0_58, %c0_59, %c0_60] : memref<2x8x32xf32, #tpu.memory_space<vmem>>, vector<1x8x32xf32>
    %175 = vector.shape_cast %174 : vector<1x8x32xf32> to vector<8x32xf32>
    %176 = vector.shape_cast %172 : vector<8x32xf32> to vector<1x8x32xf32>
    tpu.vector_store %arg10[%c0_58, %c0_59, %c0_60], %176 {strides = array<i32>} : memref<2x8x32xf32, #tpu.memory_space<vmem>>, vector<1x8x32xf32>,
    %c0_61 = arith.constant 0 : index
    %c0_62 = arith.constant 0 : index
    %c0_63 = arith.constant 0 : index
    %177 = vector.load %arg11[%c0_61, %c0_62, %c0_63] : memref<2x8x32xf32, #tpu.memory_space<vmem>>, vector<1x8x32xf32>
    %178 = vector.shape_cast %177 : vector<1x8x32xf32> to vector<8x32xf32>
    %179 = vector.shape_cast %170 : vector<8x32xf32> to vector<1x8x32xf32>
    tpu.vector_store %arg11[%c0_61, %c0_62, %c0_63], %179 {strides = array<i32>} : memref<2x8x32xf32, #tpu.memory_space<vmem>>, vector<1x8x32xf32>,
    %c1 = arith.constant 1 : index
    %c0_64 = arith.constant 0 : index
    %c0_65 = arith.constant 0 : index
    %180 = vector.load %arg6[%c1, %c0_64, %c0_65] : memref<2x1x128xf32, #tpu.memory_space<vmem>>, vector<1x1x128xf32>
    %181 = vector.shape_cast %180 : vector<1x1x128xf32> to vector<1x128xf32>
    %c1_66 = arith.constant 1 : index
    %c0_67 = arith.constant 0 : index
    %c0_68 = arith.constant 0 : index
    %182 = vector.load %arg5[%c1_66, %c0_67, %c0_68] : memref<2x32x128xf32, #tpu.memory_space<vmem>>, vector<1x32x128xf32>
    %183 = vector.shape_cast %182 : vector<1x32x128xf32> to vector<32x128xf32>
    %c0_69 = arith.constant 0 : index
    %c0_70 = arith.constant 0 : index
    %184 = vector.load %arg13[%c0_69, %c0_70] : memref<64x32xf32, #tpu.memory_space<vmem>>, vector<64x32xf32>
    %c0_71 = arith.constant 0 : index
    %c0_72 = arith.constant 0 : index
    %c0_73 = arith.constant 0 : index
    %185 = vector.load %arg4[%c0_71, %c0_72, %c0_73] : memref<1x32x128xf32, #tpu.memory_space<vmem>>, vector<1x32x128xf32>
    %186 = vector.shape_cast %185 : vector<1x32x128xf32> to vector<32x128xf32>
    %cst_74 = arith.constant dense<0.000000e+00> : vector<64x128xf32>
    %187 = tpu.matmul %184, %186, %cst_74 {dimension_numbers = #tpu.dot_dimension_numbers<[1], [0], [0], [1], [0, 0, 1, 1], [], []>} : vector<64x32xf32>, vector<32x128xf32>, vector<64x128xf32> -> vector<64x128xf32>
    %188 = vector.broadcast %181 : vector<1x128xf32> to vector<64x128xf32>
    %189 = arith.addf %187, %188 : vector<64x128xf32>
    %c0_75 = arith.constant 0 : index
    %c0_76 = arith.constant 0 : index
    %190 = vector.load %arg12[%c0_75, %c0_76] : memref<64x128xf32, #tpu.memory_space<vmem>>, vector<64x128xf32>
    tpu.vector_store %arg12[%c0_75, %c0_76], %189 {strides = array<i32>} : memref<64x128xf32, #tpu.memory_space<vmem>>, vector<64x128xf32>,
    %c1_77 = arith.constant 1 : index
    %c0_78 = arith.constant 0 : index
    %c0_79 = arith.constant 0 : index
    %191 = vector.load %arg1[%c1_77, %c0_78, %c0_79] : memref<2x8x32xf32, #tpu.memory_space<vmem>>, vector<1x8x32xf32>
    %192 = vector.shape_cast %191 : vector<1x8x32xf32> to vector<8x32xf32>
    %c1_80 = arith.constant 1 : index
    %c0_81 = arith.constant 0 : index
    %c0_82 = arith.constant 0 : index
    %193 = vector.load %arg2[%c1_80, %c0_81, %c0_82] : memref<2x8x32xf32, #tpu.memory_space<vmem>>, vector<1x8x32xf32>
    %194 = vector.shape_cast %193 : vector<1x8x32xf32> to vector<8x32xf32>
    %c0_83 = arith.constant 0 : index
    %c0_84 = arith.constant 0 : index
    %195 = vector.load %arg12[%c0_83, %c0_84] : memref<64x128xf32, #tpu.memory_space<vmem>>, vector<8x128xf32>
    %cst_85 = arith.constant dense<0.000000e+00> : vector<8x128xf32>
    %196 = tpu.matmul %192, %183, %cst_85 {dimension_numbers = #tpu.dot_dimension_numbers<[1], [0], [0], [1], [0, 0, 1, 1], [], []>} : vector<8x32xf32>, vector<32x128xf32>, vector<8x128xf32> -> vector<8x128xf32>
    %197 = arith.addf %195, %196 : vector<8x128xf32>
    %198 = vector.extract_strided_slice %197 {offsets = [0, 0], sizes = [8, 96], strides = [1, 1]} : vector<8x128xf32> to vector<8x96xf32>
    %199 = arith.negf %198 : vector<8x96xf32>
    %200 = math.exp %199 : vector<8x96xf32>
    %cst_86 = arith.constant 1.000000e+00 : f32
    %201 = vector.broadcast %cst_86 : f32 to vector<8x96xf32>
    %202 = arith.addf %201, %200 : vector<8x96xf32>
    %203 = arith.divf %201, %202 : vector<8x96xf32>
    %204 = vector.extract_strided_slice %197 {offsets = [0, 96], sizes = [8, 32], strides = [1, 1]} : vector<8x128xf32> to vector<8x32xf32>
    %205 = math.tanh %204 : vector<8x32xf32>
    %206 = vector.extract_strided_slice %203 {offsets = [0, 0], sizes = [8, 32], strides = [1, 1]} : vector<8x96xf32> to vector<8x32xf32>
    %207 = vector.extract_strided_slice %203 {offsets = [0, 32], sizes = [8, 32], strides = [1, 1]} : vector<8x96xf32> to vector<8x32xf32>
    %208 = vector.extract_strided_slice %203 {offsets = [0, 64], sizes = [8, 32], strides = [1, 1]} : vector<8x96xf32> to vector<8x32xf32>
    %209 = arith.mulf %207, %194 : vector<8x32xf32>
    %210 = arith.mulf %206, %205 : vector<8x32xf32>
    %211 = arith.addf %209, %210 : vector<8x32xf32>
    %212 = math.tanh %211 : vector<8x32xf32>
    %213 = arith.mulf %208, %212 : vector<8x32xf32>
    %c0_87 = arith.constant 0 : index
    %c0_88 = arith.constant 0 : index
    %214 = vector.load %arg13[%c0_87, %c0_88] : memref<64x32xf32, #tpu.memory_space<vmem>>, vector<8x32xf32>
    tpu.vector_store %arg13[%c0_87, %c0_88], %213 {strides = array<i32>} : memref<64x32xf32, #tpu.memory_space<vmem>>, vector<8x32xf32>,
    %c8_89 = arith.constant 8 : index
    %c0_90 = arith.constant 0 : index
    %215 = vector.load %arg12[%c8_89, %c0_90] : memref<64x128xf32, #tpu.memory_space<vmem>>, vector<8x128xf32>
    %cst_91 = arith.constant dense<0.000000e+00> : vector<8x128xf32>
    %216 = tpu.matmul %213, %183, %cst_91 {dimension_numbers = #tpu.dot_dimension_numbers<[1], [0], [0], [1], [0, 0, 1, 1], [], []>} : vector<8x32xf32>, vector<32x128xf32>, vector<8x128xf32> -> vector<8x128xf32>
    %217 = arith.addf %215, %216 : vector<8x128xf32>
    %218 = vector.extract_strided_slice %217 {offsets = [0, 0], sizes = [8, 96], strides = [1, 1]} : vector<8x128xf32> to vector<8x96xf32>
    %219 = arith.negf %218 : vector<8x96xf32>
    %220 = math.exp %219 : vector<8x96xf32>
    %cst_92 = arith.constant 1.000000e+00 : f32
    %221 = vector.broadcast %cst_92 : f32 to vector<8x96xf32>
    %222 = arith.addf %221, %220 : vector<8x96xf32>
    %223 = arith.divf %221, %222 : vector<8x96xf32>
    %224 = vector.extract_strided_slice %217 {offsets = [0, 96], sizes = [8, 32], strides = [1, 1]} : vector<8x128xf32> to vector<8x32xf32>
    %225 = math.tanh %224 : vector<8x32xf32>
    %226 = vector.extract_strided_slice %223 {offsets = [0, 0], sizes = [8, 32], strides = [1, 1]} : vector<8x96xf32> to vector<8x32xf32>
    %227 = vector.extract_strided_slice %223 {offsets = [0, 32], sizes = [8, 32], strides = [1, 1]} : vector<8x96xf32> to vector<8x32xf32>
    %228 = vector.extract_strided_slice %223 {offsets = [0, 64], sizes = [8, 32], strides = [1, 1]} : vector<8x96xf32> to vector<8x32xf32>
    %229 = arith.mulf %227, %211 : vector<8x32xf32>
    %230 = arith.mulf %226, %225 : vector<8x32xf32>
    %231 = arith.addf %229, %230 : vector<8x32xf32>
    %232 = math.tanh %231 : vector<8x32xf32>
    %233 = arith.mulf %228, %232 : vector<8x32xf32>
    %c8_93 = arith.constant 8 : index
    %c0_94 = arith.constant 0 : index
    %234 = vector.load %arg13[%c8_93, %c0_94] : memref<64x32xf32, #tpu.memory_space<vmem>>, vector<8x32xf32>
    tpu.vector_store %arg13[%c8_93, %c0_94], %233 {strides = array<i32>} : memref<64x32xf32, #tpu.memory_space<vmem>>, vector<8x32xf32>,
    %c16_95 = arith.constant 16 : index
    %c0_96 = arith.constant 0 : index
    %235 = vector.load %arg12[%c16_95, %c0_96] : memref<64x128xf32, #tpu.memory_space<vmem>>, vector<8x128xf32>
    %cst_97 = arith.constant dense<0.000000e+00> : vector<8x128xf32>
    %236 = tpu.matmul %233, %183, %cst_97 {dimension_numbers = #tpu.dot_dimension_numbers<[1], [0], [0], [1], [0, 0, 1, 1], [], []>} : vector<8x32xf32>, vector<32x128xf32>, vector<8x128xf32> -> vector<8x128xf32>
    %237 = arith.addf %235, %236 : vector<8x128xf32>
    %238 = vector.extract_strided_slice %237 {offsets = [0, 0], sizes = [8, 96], strides = [1, 1]} : vector<8x128xf32> to vector<8x96xf32>
    %239 = arith.negf %238 : vector<8x96xf32>
    %240 = math.exp %239 : vector<8x96xf32>
    %cst_98 = arith.constant 1.000000e+00 : f32
    %241 = vector.broadcast %cst_98 : f32 to vector<8x96xf32>
    %242 = arith.addf %241, %240 : vector<8x96xf32>
    %243 = arith.divf %241, %242 : vector<8x96xf32>
    %244 = vector.extract_strided_slice %237 {offsets = [0, 96], sizes = [8, 32], strides = [1, 1]} : vector<8x128xf32> to vector<8x32xf32>
    %245 = math.tanh %244 : vector<8x32xf32>
    %246 = vector.extract_strided_slice %243 {offsets = [0, 0], sizes = [8, 32], strides = [1, 1]} : vector<8x96xf32> to vector<8x32xf32>
    %247 = vector.extract_strided_slice %243 {offsets = [0, 32], sizes = [8, 32], strides = [1, 1]} : vector<8x96xf32> to vector<8x32xf32>
    %248 = vector.extract_strided_slice %243 {offsets = [0, 64], sizes = [8, 32], strides = [1, 1]} : vector<8x96xf32> to vector<8x32xf32>
    %249 = arith.mulf %247, %231 : vector<8x32xf32>
    %250 = arith.mulf %246, %245 : vector<8x32xf32>
    %251 = arith.addf %249, %250 : vector<8x32xf32>
    %252 = math.tanh %251 : vector<8x32xf32>
    %253 = arith.mulf %248, %252 : vector<8x32xf32>
    %c16_99 = arith.constant 16 : index
    %c0_100 = arith.constant 0 : index
    %254 = vector.load %arg13[%c16_99, %c0_100] : memref<64x32xf32, #tpu.memory_space<vmem>>, vector<8x32xf32>
    tpu.vector_store %arg13[%c16_99, %c0_100], %253 {strides = array<i32>} : memref<64x32xf32, #tpu.memory_space<vmem>>, vector<8x32xf32>,
    %c24_101 = arith.constant 24 : index
    %c0_102 = arith.constant 0 : index
    %255 = vector.load %arg12[%c24_101, %c0_102] : memref<64x128xf32, #tpu.memory_space<vmem>>, vector<8x128xf32>
    %cst_103 = arith.constant dense<0.000000e+00> : vector<8x128xf32>
    %256 = tpu.matmul %253, %183, %cst_103 {dimension_numbers = #tpu.dot_dimension_numbers<[1], [0], [0], [1], [0, 0, 1, 1], [], []>} : vector<8x32xf32>, vector<32x128xf32>, vector<8x128xf32> -> vector<8x128xf32>
    %257 = arith.addf %255, %256 : vector<8x128xf32>
    %258 = vector.extract_strided_slice %257 {offsets = [0, 0], sizes = [8, 96], strides = [1, 1]} : vector<8x128xf32> to vector<8x96xf32>
    %259 = arith.negf %258 : vector<8x96xf32>
    %260 = math.exp %259 : vector<8x96xf32>
    %cst_104 = arith.constant 1.000000e+00 : f32
    %261 = vector.broadcast %cst_104 : f32 to vector<8x96xf32>
    %262 = arith.addf %261, %260 : vector<8x96xf32>
    %263 = arith.divf %261, %262 : vector<8x96xf32>
    %264 = vector.extract_strided_slice %257 {offsets = [0, 96], sizes = [8, 32], strides = [1, 1]} : vector<8x128xf32> to vector<8x32xf32>
    %265 = math.tanh %264 : vector<8x32xf32>
    %266 = vector.extract_strided_slice %263 {offsets = [0, 0], sizes = [8, 32], strides = [1, 1]} : vector<8x96xf32> to vector<8x32xf32>
    %267 = vector.extract_strided_slice %263 {offsets = [0, 32], sizes = [8, 32], strides = [1, 1]} : vector<8x96xf32> to vector<8x32xf32>
    %268 = vector.extract_strided_slice %263 {offsets = [0, 64], sizes = [8, 32], strides = [1, 1]} : vector<8x96xf32> to vector<8x32xf32>
    %269 = arith.mulf %267, %251 : vector<8x32xf32>
    %270 = arith.mulf %266, %265 : vector<8x32xf32>
    %271 = arith.addf %269, %270 : vector<8x32xf32>
    %272 = math.tanh %271 : vector<8x32xf32>
    %273 = arith.mulf %268, %272 : vector<8x32xf32>
    %c24_105 = arith.constant 24 : index
    %c0_106 = arith.constant 0 : index
    %274 = vector.load %arg13[%c24_105, %c0_106] : memref<64x32xf32, #tpu.memory_space<vmem>>, vector<8x32xf32>
    tpu.vector_store %arg13[%c24_105, %c0_106], %273 {strides = array<i32>} : memref<64x32xf32, #tpu.memory_space<vmem>>, vector<8x32xf32>,
    %c32_107 = arith.constant 32 : index
    %c0_108 = arith.constant 0 : index
    %275 = vector.load %arg12[%c32_107, %c0_108] : memref<64x128xf32, #tpu.memory_space<vmem>>, vector<8x128xf32>
    %cst_109 = arith.constant dense<0.000000e+00> : vector<8x128xf32>
    %276 = tpu.matmul %273, %183, %cst_109 {dimension_numbers = #tpu.dot_dimension_numbers<[1], [0], [0], [1], [0, 0, 1, 1], [], []>} : vector<8x32xf32>, vector<32x128xf32>, vector<8x128xf32> -> vector<8x128xf32>
    %277 = arith.addf %275, %276 : vector<8x128xf32>
    %278 = vector.extract_strided_slice %277 {offsets = [0, 0], sizes = [8, 96], strides = [1, 1]} : vector<8x128xf32> to vector<8x96xf32>
    %279 = arith.negf %278 : vector<8x96xf32>
    %280 = math.exp %279 : vector<8x96xf32>
    %cst_110 = arith.constant 1.000000e+00 : f32
    %281 = vector.broadcast %cst_110 : f32 to vector<8x96xf32>
    %282 = arith.addf %281, %280 : vector<8x96xf32>
    %283 = arith.divf %281, %282 : vector<8x96xf32>
    %284 = vector.extract_strided_slice %277 {offsets = [0, 96], sizes = [8, 32], strides = [1, 1]} : vector<8x128xf32> to vector<8x32xf32>
    %285 = math.tanh %284 : vector<8x32xf32>
    %286 = vector.extract_strided_slice %283 {offsets = [0, 0], sizes = [8, 32], strides = [1, 1]} : vector<8x96xf32> to vector<8x32xf32>
    %287 = vector.extract_strided_slice %283 {offsets = [0, 32], sizes = [8, 32], strides = [1, 1]} : vector<8x96xf32> to vector<8x32xf32>
    %288 = vector.extract_strided_slice %283 {offsets = [0, 64], sizes = [8, 32], strides = [1, 1]} : vector<8x96xf32> to vector<8x32xf32>
    %289 = arith.mulf %287, %271 : vector<8x32xf32>
    %290 = arith.mulf %286, %285 : vector<8x32xf32>
    %291 = arith.addf %289, %290 : vector<8x32xf32>
    %292 = math.tanh %291 : vector<8x32xf32>
    %293 = arith.mulf %288, %292 : vector<8x32xf32>
    %c32_111 = arith.constant 32 : index
    %c0_112 = arith.constant 0 : index
    %294 = vector.load %arg13[%c32_111, %c0_112] : memref<64x32xf32, #tpu.memory_space<vmem>>, vector<8x32xf32>
    tpu.vector_store %arg13[%c32_111, %c0_112], %293 {strides = array<i32>} : memref<64x32xf32, #tpu.memory_space<vmem>>, vector<8x32xf32>,
    %c40_113 = arith.constant 40 : index
    %c0_114 = arith.constant 0 : index
    %295 = vector.load %arg12[%c40_113, %c0_114] : memref<64x128xf32, #tpu.memory_space<vmem>>, vector<8x128xf32>
    %cst_115 = arith.constant dense<0.000000e+00> : vector<8x128xf32>
    %296 = tpu.matmul %293, %183, %cst_115 {dimension_numbers = #tpu.dot_dimension_numbers<[1], [0], [0], [1], [0, 0, 1, 1], [], []>} : vector<8x32xf32>, vector<32x128xf32>, vector<8x128xf32> -> vector<8x128xf32>
    %297 = arith.addf %295, %296 : vector<8x128xf32>
    %298 = vector.extract_strided_slice %297 {offsets = [0, 0], sizes = [8, 96], strides = [1, 1]} : vector<8x128xf32> to vector<8x96xf32>
    %299 = arith.negf %298 : vector<8x96xf32>
    %300 = math.exp %299 : vector<8x96xf32>
    %cst_116 = arith.constant 1.000000e+00 : f32
    %301 = vector.broadcast %cst_116 : f32 to vector<8x96xf32>
    %302 = arith.addf %301, %300 : vector<8x96xf32>
    %303 = arith.divf %301, %302 : vector<8x96xf32>
    %304 = vector.extract_strided_slice %297 {offsets = [0, 96], sizes = [8, 32], strides = [1, 1]} : vector<8x128xf32> to vector<8x32xf32>
    %305 = math.tanh %304 : vector<8x32xf32>
    %306 = vector.extract_strided_slice %303 {offsets = [0, 0], sizes = [8, 32], strides = [1, 1]} : vector<8x96xf32> to vector<8x32xf32>
    %307 = vector.extract_strided_slice %303 {offsets = [0, 32], sizes = [8, 32], strides = [1, 1]} : vector<8x96xf32> to vector<8x32xf32>
    %308 = vector.extract_strided_slice %303 {offsets = [0, 64], sizes = [8, 32], strides = [1, 1]} : vector<8x96xf32> to vector<8x32xf32>
    %309 = arith.mulf %307, %291 : vector<8x32xf32>
    %310 = arith.mulf %306, %305 : vector<8x32xf32>
    %311 = arith.addf %309, %310 : vector<8x32xf32>
    %312 = math.tanh %311 : vector<8x32xf32>
    %313 = arith.mulf %308, %312 : vector<8x32xf32>
    %c40_117 = arith.constant 40 : index
    %c0_118 = arith.constant 0 : index
    %314 = vector.load %arg13[%c40_117, %c0_118] : memref<64x32xf32, #tpu.memory_space<vmem>>, vector<8x32xf32>
    tpu.vector_store %arg13[%c40_117, %c0_118], %313 {strides = array<i32>} : memref<64x32xf32, #tpu.memory_space<vmem>>, vector<8x32xf32>,
    %c48_119 = arith.constant 48 : index
    %c0_120 = arith.constant 0 : index
    %315 = vector.load %arg12[%c48_119, %c0_120] : memref<64x128xf32, #tpu.memory_space<vmem>>, vector<8x128xf32>
    %cst_121 = arith.constant dense<0.000000e+00> : vector<8x128xf32>
    %316 = tpu.matmul %313, %183, %cst_121 {dimension_numbers = #tpu.dot_dimension_numbers<[1], [0], [0], [1], [0, 0, 1, 1], [], []>} : vector<8x32xf32>, vector<32x128xf32>, vector<8x128xf32> -> vector<8x128xf32>
    %317 = arith.addf %315, %316 : vector<8x128xf32>
    %318 = vector.extract_strided_slice %317 {offsets = [0, 0], sizes = [8, 96], strides = [1, 1]} : vector<8x128xf32> to vector<8x96xf32>
    %319 = arith.negf %318 : vector<8x96xf32>
    %320 = math.exp %319 : vector<8x96xf32>
    %cst_122 = arith.constant 1.000000e+00 : f32
    %321 = vector.broadcast %cst_122 : f32 to vector<8x96xf32>
    %322 = arith.addf %321, %320 : vector<8x96xf32>
    %323 = arith.divf %321, %322 : vector<8x96xf32>
    %324 = vector.extract_strided_slice %317 {offsets = [0, 96], sizes = [8, 32], strides = [1, 1]} : vector<8x128xf32> to vector<8x32xf32>
    %325 = math.tanh %324 : vector<8x32xf32>
    %326 = vector.extract_strided_slice %323 {offsets = [0, 0], sizes = [8, 32], strides = [1, 1]} : vector<8x96xf32> to vector<8x32xf32>
    %327 = vector.extract_strided_slice %323 {offsets = [0, 32], sizes = [8, 32], strides = [1, 1]} : vector<8x96xf32> to vector<8x32xf32>
    %328 = vector.extract_strided_slice %323 {offsets = [0, 64], sizes = [8, 32], strides = [1, 1]} : vector<8x96xf32> to vector<8x32xf32>
    %329 = arith.mulf %327, %311 : vector<8x32xf32>
    %330 = arith.mulf %326, %325 : vector<8x32xf32>
    %331 = arith.addf %329, %330 : vector<8x32xf32>
    %332 = math.tanh %331 : vector<8x32xf32>
    %333 = arith.mulf %328, %332 : vector<8x32xf32>
    %c48_123 = arith.constant 48 : index
    %c0_124 = arith.constant 0 : index
    %334 = vector.load %arg13[%c48_123, %c0_124] : memref<64x32xf32, #tpu.memory_space<vmem>>, vector<8x32xf32>
    tpu.vector_store %arg13[%c48_123, %c0_124], %333 {strides = array<i32>} : memref<64x32xf32, #tpu.memory_space<vmem>>, vector<8x32xf32>,
    %c56_125 = arith.constant 56 : index
    %c0_126 = arith.constant 0 : index
    %335 = vector.load %arg12[%c56_125, %c0_126] : memref<64x128xf32, #tpu.memory_space<vmem>>, vector<8x128xf32>
    %cst_127 = arith.constant dense<0.000000e+00> : vector<8x128xf32>
    %336 = tpu.matmul %333, %183, %cst_127 {dimension_numbers = #tpu.dot_dimension_numbers<[1], [0], [0], [1], [0, 0, 1, 1], [], []>} : vector<8x32xf32>, vector<32x128xf32>, vector<8x128xf32> -> vector<8x128xf32>
    %337 = arith.addf %335, %336 : vector<8x128xf32>
    %338 = vector.extract_strided_slice %337 {offsets = [0, 0], sizes = [8, 96], strides = [1, 1]} : vector<8x128xf32> to vector<8x96xf32>
    %339 = arith.negf %338 : vector<8x96xf32>
    %340 = math.exp %339 : vector<8x96xf32>
    %cst_128 = arith.constant 1.000000e+00 : f32
    %341 = vector.broadcast %cst_128 : f32 to vector<8x96xf32>
    %342 = arith.addf %341, %340 : vector<8x96xf32>
    %343 = arith.divf %341, %342 : vector<8x96xf32>
    %344 = vector.extract_strided_slice %337 {offsets = [0, 96], sizes = [8, 32], strides = [1, 1]} : vector<8x128xf32> to vector<8x32xf32>
    %345 = math.tanh %344 : vector<8x32xf32>
    %346 = vector.extract_strided_slice %343 {offsets = [0, 0], sizes = [8, 32], strides = [1, 1]} : vector<8x96xf32> to vector<8x32xf32>
    %347 = vector.extract_strided_slice %343 {offsets = [0, 32], sizes = [8, 32], strides = [1, 1]} : vector<8x96xf32> to vector<8x32xf32>
    %348 = vector.extract_strided_slice %343 {offsets = [0, 64], sizes = [8, 32], strides = [1, 1]} : vector<8x96xf32> to vector<8x32xf32>
    %349 = arith.mulf %347, %331 : vector<8x32xf32>
    %350 = arith.mulf %346, %345 : vector<8x32xf32>
    %351 = arith.addf %349, %350 : vector<8x32xf32>
    %352 = math.tanh %351 : vector<8x32xf32>
    %353 = arith.mulf %348, %352 : vector<8x32xf32>
    %c56_129 = arith.constant 56 : index
    %c0_130 = arith.constant 0 : index
    %354 = vector.load %arg13[%c56_129, %c0_130] : memref<64x32xf32, #tpu.memory_space<vmem>>, vector<8x32xf32>
    tpu.vector_store %arg13[%c56_129, %c0_130], %353 {strides = array<i32>} : memref<64x32xf32, #tpu.memory_space<vmem>>, vector<8x32xf32>,
    %c1_131 = arith.constant 1 : index
    %c0_132 = arith.constant 0 : index
    %c0_133 = arith.constant 0 : index
    %355 = vector.load %arg10[%c1_131, %c0_132, %c0_133] : memref<2x8x32xf32, #tpu.memory_space<vmem>>, vector<1x8x32xf32>
    %356 = vector.shape_cast %355 : vector<1x8x32xf32> to vector<8x32xf32>
    %357 = vector.shape_cast %353 : vector<8x32xf32> to vector<1x8x32xf32>
    tpu.vector_store %arg10[%c1_131, %c0_132, %c0_133], %357 {strides = array<i32>} : memref<2x8x32xf32, #tpu.memory_space<vmem>>, vector<1x8x32xf32>,
    %c1_134 = arith.constant 1 : index
    %c0_135 = arith.constant 0 : index
    %c0_136 = arith.constant 0 : index
    %358 = vector.load %arg11[%c1_134, %c0_135, %c0_136] : memref<2x8x32xf32, #tpu.memory_space<vmem>>, vector<1x8x32xf32>
    %359 = vector.shape_cast %358 : vector<1x8x32xf32> to vector<8x32xf32>
    %360 = vector.shape_cast %351 : vector<8x32xf32> to vector<1x8x32xf32>
    tpu.vector_store %arg11[%c1_134, %c0_135, %c0_136], %360 {strides = array<i32>} : memref<2x8x32xf32, #tpu.memory_space<vmem>>, vector<1x8x32xf32>,
    %c0_137 = arith.constant 0 : index
    %c0_138 = arith.constant 0 : index
    %361 = vector.load %arg13[%c0_137, %c0_138] : memref<64x32xf32, #tpu.memory_space<vmem>>, vector<64x32xf32>
    %c0_139 = arith.constant 0 : index
    %c0_140 = arith.constant 0 : index
    %362 = vector.load %arg7[%c0_139, %c0_140] : memref<32x128xf32, #tpu.memory_space<vmem>>, vector<32x128xf32>
    %cst_141 = arith.constant dense<0.000000e+00> : vector<64x128xf32>
    %363 = tpu.matmul %361, %362, %cst_141 {dimension_numbers = #tpu.dot_dimension_numbers<[1], [0], [0], [1], [0, 0, 1, 1], [], []>} : vector<64x32xf32>, vector<32x128xf32>, vector<64x128xf32> -> vector<64x128xf32>
    %c0_142 = arith.constant 0 : index
    %c0_143 = arith.constant 0 : index
    %364 = vector.load %arg8[%c0_142, %c0_143] : memref<1x128xf32, #tpu.memory_space<vmem>>, vector<1x128xf32>
    %365 = vector.broadcast %364 : vector<1x128xf32> to vector<64x128xf32>
    %366 = arith.addf %363, %365 : vector<64x128xf32>
    %c0_144 = arith.constant 0 : index
    %c0_145 = arith.constant 0 : index
    %367 = vector.load %arg9[%c0_144, %c0_145] : memref<64x128xf32, #tpu.memory_space<vmem>>, vector<64x128xf32>
    tpu.vector_store %arg9[%c0_144, %c0_145], %366 {strides = array<i32>} : memref<64x128xf32, #tpu.memory_space<vmem>>, vector<64x128xf32>,
    return
  }
}

</mosaic_0001>

<llo_original>
// kernel: tpu_custom_call.1
$region0: #{tpu_custom_call.1}
  #allocation0 [shape = 'u32[]', space=smem, size = 0x4, offset = 0x4, fixed_abs, tag = 'smem constant byte address 0x4 - core index']
  #allocation1 [shape = 'u32[144,128]{1,0:T(1,128)}', space=vmem, size = 0x12000, scoped, tag = 'internal scratch']
  #allocation2 [shape = 'f32[64,128]{1,0:T(8,128)}', space=vmem, size = 0x8000, scoped, tag = 'scratch operand']
  #allocation3 [shape = 'f32[64,32]{1,0:T(8,128)}', space=vmem, size = 0x8000, scoped, tag = 'scratch operand']
  %s0 = inlined_call_operand.vmem [shape: f32[64,16], index: 0, kind: input, shape index: {}]
  %s1 = inlined_call_operand.hbm [shape: f32[2,8,32], index: 1, kind: input, shape index: {}]
  %s2 = inlined_call_operand.hbm [shape: f32[2,8,32], index: 2, kind: input, shape index: {}]
  %s3 = inlined_call_operand.hbm [shape: f32[16,128], index: 3, kind: input, shape index: {}]
  %s4 = inlined_call_operand.vmem [shape: f32[1,32,128], index: 4, kind: input, shape index: {}]
  %s5 = inlined_call_operand.vmem [shape: f32[2,32,128], index: 5, kind: input, shape index: {}]
  %s6 = inlined_call_operand.vmem [shape: f32[2,1,128], index: 6, kind: input, shape index: {}]
  %s7 = inlined_call_operand.hbm [shape: f32[32,128], index: 7, kind: input, shape index: {}]
  %s8 = inlined_call_operand.vmem [shape: f32[1,128], index: 8, kind: input, shape index: {}]
  %s9 = inlined_call_operand.hbm [shape: f32[64,128], index: 9, kind: output, shape index: {0}]
  %s10 = inlined_call_operand.hbm [shape: f32[2,8,32], index: 10, kind: output, shape index: {1}]
  %s11 = inlined_call_operand.hbm [shape: f32[2,8,32], index: 11, kind: output, shape index: {2}]
  %12 = xla_tuple %s9, %s10, %s11
  %s13 = sld [smem:[#allocation0]]
  $region78: #{tpu_custom_call.1} parent=0
    _
  %s15 = ssub.s32 1, %s13
  %s16 = scalar_select 0, %s15, %s13
  $region1: #{tpu_custom_call.1} parent=0
    #allocation4 [shape = 'u8[8192]{0}', space=vmem, size = 0x2000, scoped, tag = 'input window, operand 1, single buffered']
    #allocation5 [shape = 's32[1]{0}', space=sflag, size = 0x4, scoped, tag = 'scoped memory for tpu_custom_call.1']
    #allocation6 [shape = 's32[1]{0}', space=sflag, size = 0x4, scoped, tag = 'scoped memory for tpu_custom_call.1']
    #allocation7 [shape = 'u8[8192]{0}', space=vmem, size = 0x2000, scoped, tag = 'input window, operand 2, single buffered']
    #allocation8 [shape = 's32[1]{0}', space=sflag, size = 0x4, scoped, tag = 'scoped memory for tpu_custom_call.1']
    #allocation9 [shape = 'u8[8192]{0}', space=vmem, size = 0x2000, scoped, tag = 'input window, operand 3, single buffered']
    #allocation10 [shape = 'u8[16384]{0}', space=vmem, size = 0x4000, scoped, tag = 'input window, operand 7, single buffered']
    #allocation11 [shape = 's32[1]{0}', space=sflag, size = 0x4, scoped, tag = 'scoped memory for tpu_custom_call.1']
    #allocation12 [shape = 'u8[32768]{0}', space=vmem, size = 0x8000, scoped, tag = 'output window, operand 0, single buffered']
    #allocation13 [shape = 'u8[8192]{0}', space=vmem, size = 0x2000, scoped, tag = 'output window, operand 1, single buffered']
    #allocation14 [shape = 's32[1]{0}', space=sflag, size = 0x4, scoped, tag = 'scoped memory for tpu_custom_call.1']
    #allocation15 [shape = 'u8[8192]{0}', space=vmem, size = 0x2000, scoped, tag = 'output window, operand 2, single buffered']
    %17 = vsyncpa [#allocation5], 0
    %18 = vsyncpa [#allocation8], 0
    %19 = vsyncpa [#allocation11], 0
    %20 = vsyncpa [#allocation6], 0
    %21 = vsyncpa [#allocation14], 0
    // Predicated region
    $region2: #{tpu_custom_call.1} parent=1 // pred_check
      _
    $region3: #{tpu_custom_call.1} parent=1 // pred_check_branch
      %23 = sbr.rel (0) target = $region5
    $region4: #{tpu_custom_call.1} parent=1 // pred_region
      _
    $region5: #{tpu_custom_call.1} parent=1 // pred_fallthru
      _
    // Predicated region
    $region6: #{tpu_custom_call.1} parent=1 // pred_check
      _
    $region7: #{tpu_custom_call.1} parent=1 // pred_check_branch
      %25 = sbr.rel (0) target = $region9
    $region8: #{tpu_custom_call.1} parent=1 // pred_region
      %s27 = ssub.s32 256, 256
      %28 = vsyncadd [#allocation5], %s27
      %s29 = sshll.u32 [#allocation4], 4
      %s30 = int_to_ptr.vmem [resolvable:$true] %s29
      %35 = dma.hbm_to_vmem [thread:$0]  %s1, 256, %s30, [#allocation5], 128, 128, 8
    $region9: #{tpu_custom_call.1} parent=1 // pred_fallthru
      _
    // Predicated region
    $region10: #{tpu_custom_call.1} parent=1 // pred_check
      _
    $region11: #{tpu_custom_call.1} parent=1 // pred_check_branch
      %37 = sbr.rel (0) target = $region13
    $region12: #{tpu_custom_call.1} parent=1 // pred_region
      %s39 = ssub.s32 256, 256
      %40 = vsyncadd [#allocation8], %s39
      %s41 = sshll.u32 [#allocation7], 4
      %s42 = int_to_ptr.vmem [resolvable:$true] %s41
      %47 = dma.hbm_to_vmem [thread:$0]  %s2, 256, %s42, [#allocation8], 128, 128, 8
    $region13: #{tpu_custom_call.1} parent=1 // pred_fallthru
      _
    // Predicated region
    $region14: #{tpu_custom_call.1} parent=1 // pred_check
      _
    $region15: #{tpu_custom_call.1} parent=1 // pred_check_branch
      %49 = sbr.rel (0) target = $region17
    $region16: #{tpu_custom_call.1} parent=1 // pred_region
      %s51 = ssub.s32 256, 256
      %52 = vsyncadd [#allocation8], %s51
      %s53 = sshll.u32 [#allocation9], 4
      %s54 = int_to_ptr.vmem [resolvable:$true] %s53
      %59 = dma.hbm_to_vmem [thread:$0]  %s3, 256, %s54, [#allocation8], 128, 128, 8
    $region17: #{tpu_custom_call.1} parent=1 // pred_fallthru
      _
    // Predicated region
    $region18: #{tpu_custom_call.1} parent=1 // pred_check
      _
    $region19: #{tpu_custom_call.1} parent=1 // pred_check_branch
      %61 = sbr.rel (0) target = $region21
    $region20: #{tpu_custom_call.1} parent=1 // pred_region
      _
    $region21: #{tpu_custom_call.1} parent=1 // pred_fallthru
      _
    // Predicated region
    $region22: #{tpu_custom_call.1} parent=1 // pred_check
      _
    $region23: #{tpu_custom_call.1} parent=1 // pred_check_branch
      %63 = sbr.rel (0) target = $region25
    $region24: #{tpu_custom_call.1} parent=1 // pred_region
      _
    $region25: #{tpu_custom_call.1} parent=1 // pred_fallthru
      _
    // Predicated region
    $region26: #{tpu_custom_call.1} parent=1 // pred_check
      _
    $region27: #{tpu_custom_call.1} parent=1 // pred_check_branch
      %65 = sbr.rel (0) target = $region29
    $region28: #{tpu_custom_call.1} parent=1 // pred_region
      _
    $region29: #{tpu_custom_call.1} parent=1 // pred_fallthru
      _
    // Predicated region
    $region30: #{tpu_custom_call.1} parent=1 // pred_check
      _
    $region31: #{tpu_custom_call.1} parent=1 // pred_check_branch
      %67 = sbr.rel (0) target = $region33
    $region32: #{tpu_custom_call.1} parent=1 // pred_region
      %s69 = ssub.s32 512, 512
      %70 = vsyncadd [#allocation11], %s69
      %s71 = sshll.u32 [#allocation10], 4
      %s72 = int_to_ptr.vmem [resolvable:$true] %s71
      %77 = dma.hbm_to_vmem [thread:$0]  %s7, 512, %s72, [#allocation11], 128, 128, 8
    $region33: #{tpu_custom_call.1} parent=1 // pred_fallthru
      _
    // Predicated region
    $region34: #{tpu_custom_call.1} parent=1 // pred_check
      _
    $region35: #{tpu_custom_call.1} parent=1 // pred_check_branch
      %79 = sbr.rel (0) target = $region37
    $region36: #{tpu_custom_call.1} parent=1 // pred_region
      _
    $region37: #{tpu_custom_call.1} parent=1 // pred_fallthru
      _
    // Predicated region
    $region38: #{tpu_custom_call.1} parent=1 // pred_check
      _
    $region39: #{tpu_custom_call.1} parent=1 // pred_check_branch
      %81 = sbr.rel (0) target = $region41
    $region40: #{tpu_custom_call.1} parent=1 // pred_region
      %82 = dma.done [#allocation5], 256
    $region41: #{tpu_custom_call.1} parent=1 // pred_fallthru
      _
    // Predicated region
    $region42: #{tpu_custom_call.1} parent=1 // pred_check
      _
    $region43: #{tpu_custom_call.1} parent=1 // pred_check_branch
      %84 = sbr.rel (0) target = $region45
    $region44: #{tpu_custom_call.1} parent=1 // pred_region
      %85 = dma.done [#allocation8], 256
    $region45: #{tpu_custom_call.1} parent=1 // pred_fallthru
      _
    // Predicated region
    $region46: #{tpu_custom_call.1} parent=1 // pred_check
      _
    $region47: #{tpu_custom_call.1} parent=1 // pred_check_branch
      %87 = sbr.rel (0) target = $region49
    $region48: #{tpu_custom_call.1} parent=1 // pred_region
      %88 = dma.done [#allocation8], 256
    $region49: #{tpu_custom_call.1} parent=1 // pred_fallthru
      _
    // Predicated region
    $region50: #{tpu_custom_call.1} parent=1 // pred_check
      _
    $region51: #{tpu_custom_call.1} parent=1 // pred_check_branch
      %90 = sbr.rel (0) target = $region53
    $region52: #{tpu_custom_call.1} parent=1 // pred_region
      %91 = dma.done [#allocation11], 512
    $region53: #{tpu_custom_call.1} parent=1 // pred_fallthru
      _
    %v92 = vld [vmem:[%s6] sm:$0x1]
    %v93 = vld [vmem:[%s5] sm:$0xff]
    %v94 = vld [vmem:[%s5 + $0x8] sm:$0xff]
    %v95 = vld [vmem:[%s5 + $0x10] sm:$0xff]
    %v96 = vld [vmem:[%s5 + $0x18] sm:$0xff]
    %v97 = vld [vmem:[%s0] sm:$0xff]
    %v98 = vld [vmem:[%s0 + $0x8] sm:$0xff]
    %v99 = vld [vmem:[%s0 + $0x10] sm:$0xff]
    %v100 = vld [vmem:[%s0 + $0x18] sm:$0xff]
    %v101 = vld [vmem:[%s0 + $0x20] sm:$0xff]
    %v102 = vld [vmem:[%s0 + $0x28] sm:$0xff]
    %v103 = vld [vmem:[%s0 + $0x30] sm:$0xff]
    %v104 = vld [vmem:[%s0 + $0x38] sm:$0xff]
    %v105 = vld [vmem:[#allocation9] sm:$0xff]
    %v106 = vld [vmem:[#allocation9 + $0x8] sm:$0xff]
    %v108 = vlaneseq
    %v109 = vshrl.u32 %v108, 7
    %v110 = vsub.s32 0, %v109
    %v111 = vrot.slane %v92, %v110
    %vm113 = vcmask 130048
    %v115 = vsel %vm113, %v97, 0
    %v118 = vsel %vm113, %v98, 0
    %v121 = vsel %vm113, %v99, 0
    %v124 = vsel %vm113, %v100, 0
    %v127 = vsel %vm113, %v101, 0
    %v130 = vsel %vm113, %v102, 0
    %v133 = vsel %vm113, %v103, 0
    %v136 = vsel %vm113, %v104, 0
    %138 = vmatprep.subr.mxu0 0.0
    %139 = vmatpush1.msra.mxu0 %v105
    %140 = vmatprep.subr.mxu0 0.0
    %141 = vmatpush1.msra.mxu0 %v106
    %142 = vmatprep.subr.mxu0 0.0
    %143 = vmatpush1.msra.mxu0 0.0
    %144 = vmatprep.subr.mxu0 0.0
    %145 = vmatpush1.msra.mxu0 0.0
    %146 = vmatprep.subr.mxu0 0.0
    %147 = vmatpush1.msra.mxu0 0.0
    %148 = vmatprep.subr.mxu0 0.0
    %149 = vmatpush1.msra.mxu0 0.0
    %150 = vmatprep.subr.mxu0 0.0
    %151 = vmatpush1.msra.mxu0 0.0
    %152 = vmatprep.subr.mxu0 0.0
    %153 = vmatpush1.msra.mxu0 0.0
    %154 = vmatprep.subr.mxu0 0.0
    %155 = vmatpush1.msra.mxu0 0.0
    %156 = vmatprep.subr.mxu0 0.0
    %157 = vmatpush1.msra.mxu0 0.0
    %158 = vmatprep.subr.mxu0 0.0
    %159 = vmatpush1.msra.mxu0 0.0
    %160 = vmatprep.subr.mxu0 0.0
    %161 = vmatpush1.msra.mxu0 0.0
    %162 = vmatprep.subr.mxu0 0.0
    %163 = vmatpush1.msra.mxu0 0.0
    %164 = vmatprep.subr.mxu0 0.0
    %165 = vmatpush1.msra.mxu0 0.0
    %166 = vmatprep.subr.mxu0 0.0
    %167 = vmatpush1.msra.mxu0 0.0
    %168 = vmatprep.subr.mxu0 0.0
    %169 = vmatpush1.msra.mxu0 0.0
    %170 = vmatprep.subr.mxu0 0.0
    %171 = vmatpush1.msra.mxu0 0.0
    %172 = vmatprep.subr.mxu0 0.0
    %173 = vmatpush1.msra.mxu0 0.0
    %174 = vmatprep.subr.mxu0 0.0
    %175 = vmatpush1.msra.mxu0 0.0
    %176 = vmatprep.subr.mxu0 0.0
    %177 = vmatpush1.msra.mxu0 0.0
    %178 = vmatprep.subr.mxu0 0.0
    %179 = vmatpush1.msra.mxu0 0.0
    %180 = vmatprep.subr.mxu0 0.0
    %181 = vmatpush1.msra.mxu0 0.0
    %182 = vmatprep.subr.mxu0 0.0
    %183 = vmatpush1.msra.mxu0 0.0
    %184 = vmatprep.subr.mxu0 0.0
    %185 = vmatpush1.msra.mxu0 0.0
    %186 = vmatprep.subr.mxu0 0.0
    %187 = vmatpush1.msra.mxu0 0.0
    %188 = vmatprep.subr.mxu0 0.0
    %189 = vmatpush1.msra.mxu0 0.0
    %190 = vmatprep.subr.mxu0 0.0
    %191 = vmatpush1.msra.mxu0 0.0
    %192 = vmatprep.subr.mxu0 0.0
    %193 = vmatpush1.msra.mxu0 0.0
    %194 = vmatprep.subr.mxu0 0.0
    %195 = vmatpush1.msra.mxu0 0.0
    %196 = vmatprep.subr.mxu0 0.0
    %197 = vmatpush1.msra.mxu0 0.0
    %198 = vmatprep.subr.mxu0 0.0
    %199 = vmatpush1.msra.mxu0 0.0
    %200 = vmatprep.subr.mxu0 0.0
    %201 = vmatpush1.msra.mxu0 0.0
    %202 = vmatprep.mubr.f32.mxu0 0.0
    %203 = vmatmul.mubr.f32.gmra.mrb[0].mxu0 %v115
    %v204 = vpop.f32.mrb[0].mxu0
    %v205 = vadd.f32 %v111, %v204
    %v206 = vpop.f32.mrb[0].mxu0
    %207 = vmatprep.mubr.f32.mxu0 0.0
    %208 = vmatmul.mubr.f32.gmra.mrb[0].mxu0 %v118
    %v209 = vpop.f32.mrb[0].mxu0
    %v210 = vadd.f32 %v111, %v209
    %v211 = vpop.f32.mrb[0].mxu0
    %212 = vmatprep.mubr.f32.mxu0 0.0
    %213 = vmatmul.mubr.f32.gmra.mrb[0].mxu0 %v121
    %v214 = vpop.f32.mrb[0].mxu0
    %v215 = vadd.f32 %v111, %v214
    %v216 = vpop.f32.mrb[0].mxu0
    %217 = vmatprep.mubr.f32.mxu0 0.0
    %218 = vmatmul.mubr.f32.gmra.mrb[0].mxu0 %v124
    %v219 = vpop.f32.mrb[0].mxu0
    %v220 = vadd.f32 %v111, %v219
    %v221 = vpop.f32.mrb[0].mxu0
    %222 = vmatprep.mubr.f32.mxu0 0.0
    %223 = vmatmul.mubr.f32.gmra.mrb[0].mxu0 %v127
    %v224 = vpop.f32.mrb[0].mxu0
    %v225 = vadd.f32 %v111, %v224
    %v226 = vpop.f32.mrb[0].mxu0
    %227 = vmatprep.mubr.f32.mxu0 0.0
    %228 = vmatmul.mubr.f32.gmra.mrb[0].mxu0 %v130
    %v229 = vpop.f32.mrb[0].mxu0
    %v230 = vadd.f32 %v111, %v229
    %v231 = vpop.f32.mrb[0].mxu0
    %232 = vmatprep.mubr.f32.mxu0 0.0
    %233 = vmatmul.mubr.f32.gmra.mrb[0].mxu0 %v133
    %v234 = vpop.f32.mrb[0].mxu0
    %v235 = vadd.f32 %v111, %v234
    %v236 = vpop.f32.mrb[0].mxu0
    %237 = vmatprep.mubr.f32.mxu0 0.0
    %238 = vmatmul.mubr.f32.gmra.mrb[0].mxu0 %v136
    %v239 = vpop.f32.mrb[0].mxu0
    %v240 = vadd.f32 %v111, %v239
    %v241 = vpop.f32.mrb[0].mxu0
    %242 = vdwg.mxu0
    %243 = vst [vmem:[#allocation2] sm:$0xff] %v205
    %244 = vst [vmem:[#allocation2 + $0x8] sm:$0xff] %v210
    %245 = vst [vmem:[#allocation2 + $0x10] sm:$0xff] %v215
    %246 = vst [vmem:[#allocation2 + $0x18] sm:$0xff] %v220
    %247 = vst [vmem:[#allocation2 + $0x20] sm:$0xff] %v225
    %248 = vst [vmem:[#allocation2 + $0x28] sm:$0xff] %v230
    %249 = vst [vmem:[#allocation2 + $0x30] sm:$0xff] %v235
    %250 = vst [vmem:[#allocation2 + $0x38] sm:$0xff] %v240
    %v251 = vld [vmem:[#allocation4] sm:$0xff]
    %v252 = vld [vmem:[#allocation7] sm:$0xff]
    %v253 = vld [vmem:[#allocation2] sm:$0xff]
    %vm254 = vcmask 261120
    %v256 = vsel %vm254, %v251, 0
    %258 = vmatprep.subr.mxu0 0.0
    %259 = vmatpush1.msra.mxu0 %v93
    %260 = vmatprep.subr.mxu0 0.0
    %261 = vmatpush1.msra.mxu0 %v94
    %262 = vmatprep.subr.mxu0 0.0
    %263 = vmatpush1.msra.mxu0 %v95
    %264 = vmatprep.subr.mxu0 0.0
    %265 = vmatpush1.msra.mxu0 %v96
    %266 = vmatprep.subr.mxu0 0.0
    %267 = vmatpush1.msra.mxu0 0.0
    %268 = vmatprep.subr.mxu0 0.0
    %269 = vmatpush1.msra.mxu0 0.0
    %270 = vmatprep.subr.mxu0 0.0
    %271 = vmatpush1.msra.mxu0 0.0
    %272 = vmatprep.subr.mxu0 0.0
    %273 = vmatpush1.msra.mxu0 0.0
    %274 = vmatprep.subr.mxu0 0.0
    %275 = vmatpush1.msra.mxu0 0.0
    %276 = vmatprep.subr.mxu0 0.0
    %277 = vmatpush1.msra.mxu0 0.0
    %278 = vmatprep.subr.mxu0 0.0
    %279 = vmatpush1.msra.mxu0 0.0
    %280 = vmatprep.subr.mxu0 0.0
    %281 = vmatpush1.msra.mxu0 0.0
    %282 = vmatprep.subr.mxu0 0.0
    %283 = vmatpush1.msra.mxu0 0.0
    %284 = vmatprep.subr.mxu0 0.0
    %285 = vmatpush1.msra.mxu0 0.0
    %286 = vmatprep.subr.mxu0 0.0
    %287 = vmatpush1.msra.mxu0 0.0
    %288 = vmatprep.subr.mxu0 0.0
    %289 = vmatpush1.msra.mxu0 0.0
    %290 = vmatprep.subr.mxu0 0.0
    %291 = vmatpush1.msra.mxu0 0.0
    %292 = vmatprep.subr.mxu0 0.0
    %293 = vmatpush1.msra.mxu0 0.0
    %294 = vmatprep.subr.mxu0 0.0
    %295 = vmatpush1.msra.mxu0 0.0
    %296 = vmatprep.subr.mxu0 0.0
    %297 = vmatpush1.msra.mxu0 0.0
    %298 = vmatprep.subr.mxu0 0.0
    %299 = vmatpush1.msra.mxu0 0.0
    %300 = vmatprep.subr.mxu0 0.0
    %301 = vmatpush1.msra.mxu0 0.0
    %302 = vmatprep.subr.mxu0 0.0
    %303 = vmatpush1.msra.mxu0 0.0
    %304 = vmatprep.subr.mxu0 0.0
    %305 = vmatpush1.msra.mxu0 0.0
    %306 = vmatprep.subr.mxu0 0.0
    %307 = vmatpush1.msra.mxu0 0.0
    %308 = vmatprep.subr.mxu0 0.0
    %309 = vmatpush1.msra.mxu0 0.0
    %310 = vmatprep.subr.mxu0 0.0
    %311 = vmatpush1.msra.mxu0 0.0
    %312 = vmatprep.subr.mxu0 0.0
    %313 = vmatpush1.msra.mxu0 0.0
    %314 = vmatprep.subr.mxu0 0.0
    %315 = vmatpush1.msra.mxu0 0.0
    %316 = vmatprep.subr.mxu0 0.0
    %317 = vmatpush1.msra.mxu0 0.0
    %318 = vmatprep.subr.mxu0 0.0
    %319 = vmatpush1.msra.mxu0 0.0
    %320 = vmatprep.subr.mxu0 0.0
    %321 = vmatpush1.msra.mxu0 0.0
    %322 = vmatprep.mubr.f32.mxu0 0.0
    %323 = vmatmul.mubr.f32.gmra.mrb[0].mxu0 %v256
    %v324 = vpop.f32.mrb[0].mxu0
    %v325 = vadd.f32 0.0, %v324
    %v326 = vpop.f32.mrb[0].mxu0
    %327 = vdwg.mxu0
    %v328 = vadd.f32 %v253, %v325
    %v329 = vxor.u32 %v328, 2147483648
    %v330 = vmul.f32 %v329, 1.442695
    %v331 = vpow.pop %v330
    %v332 = vadd.f32 %v331, 1.0
    %v333 = vrcp.pop %v332
    %v334 = vmul.f32 1.0, %v333
    %v335 = vtanh.pop %v328
    %337 = vrot.lane.b32.xlu0 %v252, 32
    %v338 = vpop.permute.xlu0 %337
    %v340 = vmul.f32 %v334, %v338
    %342 = vrot.lane.b32.xlu0 %v335, 32
    %v343 = vpop.permute.xlu0 %342
    %v345 = vmul.f32 %v334, %v343
    %347 = vrot.lane.b32.xlu0 %v345, 32
    %v348 = vpop.permute.xlu0 %347
    %v350 = vadd.f32 %v340, %v348
    %v351 = vtanh.pop %v350
    %353 = vrot.lane.b32.xlu0 %v351, 32
    %v354 = vpop.permute.xlu0 %353
    %v356 = vmul.f32 %v334, %v354
    %358 = vrot.lane.b32.xlu0 %v356, 64
    %v359 = vpop.permute.xlu0 %358
    %361 = vst.msk [vmem:[#allocation3] sm:$0xff] %vm254, %v359
    %v362 = vld [vmem:[#allocation2 + $0x8] sm:$0xff]
    %v363 = vsel %vm254, %v359, 0
    %365 = vmatprep.subr.mxu0 0.0
    %366 = vmatpush1.msra.mxu0 %v93
    %367 = vmatprep.subr.mxu0 0.0
    %368 = vmatpush1.msra.mxu0 %v94
    %369 = vmatprep.subr.mxu0 0.0
    %370 = vmatpush1.msra.mxu0 %v95
    %371 = vmatprep.subr.mxu0 0.0
    %372 = vmatpush1.msra.mxu0 %v96
    %373 = vmatprep.subr.mxu0 0.0
    %374 = vmatpush1.msra.mxu0 0.0
    %375 = vmatprep.subr.mxu0 0.0
    %376 = vmatpush1.msra.mxu0 0.0
    %377 = vmatprep.subr.mxu0 0.0
    %378 = vmatpush1.msra.mxu0 0.0
    %379 = vmatprep.subr.mxu0 0.0
    %380 = vmatpush1.msra.mxu0 0.0
    %381 = vmatprep.subr.mxu0 0.0
    %382 = vmatpush1.msra.mxu0 0.0
    %383 = vmatprep.subr.mxu0 0.0
    %384 = vmatpush1.msra.mxu0 0.0
    %385 = vmatprep.subr.mxu0 0.0
    %386 = vmatpush1.msra.mxu0 0.0
    %387 = vmatprep.subr.mxu0 0.0
    %388 = vmatpush1.msra.mxu0 0.0
    %389 = vmatprep.subr.mxu0 0.0
    %390 = vmatpush1.msra.mxu0 0.0
    %391 = vmatprep.subr.mxu0 0.0
    %392 = vmatpush1.msra.mxu0 0.0
    %393 = vmatprep.subr.mxu0 0.0
    %394 = vmatpush1.msra.mxu0 0.0
    %395 = vmatprep.subr.mxu0 0.0
    %396 = vmatpush1.msra.mxu0 0.0
    %397 = vmatprep.subr.mxu0 0.0
    %398 = vmatpush1.msra.mxu0 0.0
    %399 = vmatprep.subr.mxu0 0.0
    %400 = vmatpush1.msra.mxu0 0.0
    %401 = vmatprep.subr.mxu0 0.0
    %402 = vmatpush1.msra.mxu0 0.0
    %403 = vmatprep.subr.mxu0 0.0
    %404 = vmatpush1.msra.mxu0 0.0
    %405 = vmatprep.subr.mxu0 0.0
    %406 = vmatpush1.msra.mxu0 0.0
    %407 = vmatprep.subr.mxu0 0.0
    %408 = vmatpush1.msra.mxu0 0.0
    %409 = vmatprep.subr.mxu0 0.0
    %410 = vmatpush1.msra.mxu0 0.0
    %411 = vmatprep.subr.mxu0 0.0
    %412 = vmatpush1.msra.mxu0 0.0
    %413 = vmatprep.subr.mxu0 0.0
    %414 = vmatpush1.msra.mxu0 0.0
    %415 = vmatprep.subr.mxu0 0.0
    %416 = vmatpush1.msra.mxu0 0.0
    %417 = vmatprep.subr.mxu0 0.0
    %418 = vmatpush1.msra.mxu0 0.0
    %419 = vmatprep.subr.mxu0 0.0
    %420 = vmatpush1.msra.mxu0 0.0
    %421 = vmatprep.subr.mxu0 0.0
    %422 = vmatpush1.msra.mxu0 0.0
    %423 = vmatprep.subr.mxu0 0.0
    %424 = vmatpush1.msra.mxu0 0.0
    %425 = vmatprep.subr.mxu0 0.0
    %426 = vmatpush1.msra.mxu0 0.0
    %427 = vmatprep.subr.mxu0 0.0
    %428 = vmatpush1.msra.mxu0 0.0
    %429 = vmatprep.mubr.f32.mxu0 0.0
    %430 = vmatmul.mubr.f32.gmra.mrb[0].mxu0 %v363
    %v431 = vpop.f32.mrb[0].mxu0
    %v432 = vadd.f32 0.0, %v431
    %v433 = vpop.f32.mrb[0].mxu0
    %434 = vdwg.mxu0
    %v435 = vadd.f32 %v362, %v432
    %v436 = vxor.u32 %v435, 2147483648
    %v437 = vmul.f32 %v436, 1.442695
    %v438 = vpow.pop %v437
    %v439 = vadd.f32 %v438, 1.0
    %v440 = vrcp.pop %v439
    %v441 = vmul.f32 1.0, %v440
    %v442 = vtanh.pop %v435
    %v443 = vmul.f32 %v441, %v350
    %445 = vrot.lane.b32.xlu0 %v442, 32
    %v446 = vpop.permute.xlu0 %445
    %v448 = vmul.f32 %v441, %v446
    %450 = vrot.lane.b32.xlu0 %v448, 32
    %v451 = vpop.permute.xlu0 %450
    %v453 = vadd.f32 %v443, %v451
    %v454 = vtanh.pop %v453
    %456 = vrot.lane.b32.xlu0 %v454, 32
    %v457 = vpop.permute.xlu0 %456
    %v459 = vmul.f32 %v441, %v457
    %461 = vrot.lane.b32.xlu0 %v459, 64
    %v462 = vpop.permute.xlu0 %461
    %464 = vst.msk [vmem:[#allocation3 + $0x8] sm:$0xff] %vm254, %v462
    %v465 = vld [vmem:[#allocation2 + $0x10] sm:$0xff]
    %v466 = vsel %vm254, %v462, 0
    %468 = vmatprep.subr.mxu0 0.0
    %469 = vmatpush1.msra.mxu0 %v93
    %470 = vmatprep.subr.mxu0 0.0
    %471 = vmatpush1.msra.mxu0 %v94
    %472 = vmatprep.subr.mxu0 0.0
    %473 = vmatpush1.msra.mxu0 %v95
    %474 = vmatprep.subr.mxu0 0.0
    %475 = vmatpush1.msra.mxu0 %v96
    %476 = vmatprep.subr.mxu0 0.0
    %477 = vmatpush1.msra.mxu0 0.0
    %478 = vmatprep.subr.mxu0 0.0
    %479 = vmatpush1.msra.mxu0 0.0
    %480 = vmatprep.subr.mxu0 0.0
    %481 = vmatpush1.msra.mxu0 0.0
    %482 = vmatprep.subr.mxu0 0.0
    %483 = vmatpush1.msra.mxu0 0.0
    %484 = vmatprep.subr.mxu0 0.0
    %485 = vmatpush1.msra.mxu0 0.0
    %486 = vmatprep.subr.mxu0 0.0
    %487 = vmatpush1.msra.mxu0 0.0
    %488 = vmatprep.subr.mxu0 0.0
    %489 = vmatpush1.msra.mxu0 0.0
    %490 = vmatprep.subr.mxu0 0.0
    %491 = vmatpush1.msra.mxu0 0.0
    %492 = vmatprep.subr.mxu0 0.0
    %493 = vmatpush1.msra.mxu0 0.0
    %494 = vmatprep.subr.mxu0 0.0
    %495 = vmatpush1.msra.mxu0 0.0
    %496 = vmatprep.subr.mxu0 0.0
    %497 = vmatpush1.msra.mxu0 0.0
    %498 = vmatprep.subr.mxu0 0.0
    %499 = vmatpush1.msra.mxu0 0.0
    %500 = vmatprep.subr.mxu0 0.0
    %501 = vmatpush1.msra.mxu0 0.0
    %502 = vmatprep.subr.mxu0 0.0
    %503 = vmatpush1.msra.mxu0 0.0
    %504 = vmatprep.subr.mxu0 0.0
    %505 = vmatpush1.msra.mxu0 0.0
    %506 = vmatprep.subr.mxu0 0.0
    %507 = vmatpush1.msra.mxu0 0.0
    %508 = vmatprep.subr.mxu0 0.0
    %509 = vmatpush1.msra.mxu0 0.0
    %510 = vmatprep.subr.mxu0 0.0
    %511 = vmatpush1.msra.mxu0 0.0
    %512 = vmatprep.subr.mxu0 0.0
    %513 = vmatpush1.msra.mxu0 0.0
    %514 = vmatprep.subr.mxu0 0.0
    %515 = vmatpush1.msra.mxu0 0.0
    %516 = vmatprep.subr.mxu0 0.0
    %517 = vmatpush1.msra.mxu0 0.0
    %518 = vmatprep.subr.mxu0 0.0
    %519 = vmatpush1.msra.mxu0 0.0
    %520 = vmatprep.subr.mxu0 0.0
    %521 = vmatpush1.msra.mxu0 0.0
    %522 = vmatprep.subr.mxu0 0.0
    %523 = vmatpush1.msra.mxu0 0.0
    %524 = vmatprep.subr.mxu0 0.0
    %525 = vmatpush1.msra.mxu0 0.0
    %526 = vmatprep.subr.mxu0 0.0
    %527 = vmatpush1.msra.mxu0 0.0
    %528 = vmatprep.subr.mxu0 0.0
    %529 = vmatpush1.msra.mxu0 0.0
    %530 = vmatprep.subr.mxu0 0.0
    %531 = vmatpush1.msra.mxu0 0.0
    %532 = vmatprep.mubr.f32.mxu0 0.0
    %533 = vmatmul.mubr.f32.gmra.mrb[0].mxu0 %v466
    %v534 = vpop.f32.mrb[0].mxu0
    %v535 = vadd.f32 0.0, %v534
    %v536 = vpop.f32.mrb[0].mxu0
    %537 = vdwg.mxu0
    %v538 = vadd.f32 %v465, %v535
    %v539 = vxor.u32 %v538, 2147483648
    %v540 = vmul.f32 %v539, 1.442695
    %v541 = vpow.pop %v540
    %v542 = vadd.f32 %v541, 1.0
    %v543 = vrcp.pop %v542
    %v544 = vmul.f32 1.0, %v543
    %v545 = vtanh.pop %v538
    %v546 = vmul.f32 %v544, %v453
    %548 = vrot.lane.b32.xlu0 %v545, 32
    %v549 = vpop.permute.xlu0 %548
    %v551 = vmul.f32 %v544, %v549
    %553 = vrot.lane.b32.xlu0 %v551, 32
    %v554 = vpop.permute.xlu0 %553
    %v556 = vadd.f32 %v546, %v554
    %v557 = vtanh.pop %v556
    %559 = vrot.lane.b32.xlu0 %v557, 32
    %v560 = vpop.permute.xlu0 %559
    %v562 = vmul.f32 %v544, %v560
    %564 = vrot.lane.b32.xlu0 %v562, 64
    %v565 = vpop.permute.xlu0 %564
    %567 = vst.msk [vmem:[#allocation3 + $0x10] sm:$0xff] %vm254, %v565
    %v568 = vld [vmem:[#allocation2 + $0x18] sm:$0xff]
    %v569 = vsel %vm254, %v565, 0
    %571 = vmatprep.subr.mxu0 0.0
    %572 = vmatpush1.msra.mxu0 %v93
    %573 = vmatprep.subr.mxu0 0.0
    %574 = vmatpush1.msra.mxu0 %v94
    %575 = vmatprep.subr.mxu0 0.0
    %576 = vmatpush1.msra.mxu0 %v95
    %577 = vmatprep.subr.mxu0 0.0
    %578 = vmatpush1.msra.mxu0 %v96
    %579 = vmatprep.subr.mxu0 0.0
    %580 = vmatpush1.msra.mxu0 0.0
    %581 = vmatprep.subr.mxu0 0.0
    %582 = vmatpush1.msra.mxu0 0.0
    %583 = vmatprep.subr.mxu0 0.0
    %584 = vmatpush1.msra.mxu0 0.0
    %585 = vmatprep.subr.mxu0 0.0
    %586 = vmatpush1.msra.mxu0 0.0
    %587 = vmatprep.subr.mxu0 0.0
    %588 = vmatpush1.msra.mxu0 0.0
    %589 = vmatprep.subr.mxu0 0.0
    %590 = vmatpush1.msra.mxu0 0.0
    %591 = vmatprep.subr.mxu0 0.0
    %592 = vmatpush1.msra.mxu0 0.0
    %593 = vmatprep.subr.mxu0 0.0
    %594 = vmatpush1.msra.mxu0 0.0
    %595 = vmatprep.subr.mxu0 0.0
    %596 = vmatpush1.msra.mxu0 0.0
    %597 = vmatprep.subr.mxu0 0.0
    %598 = vmatpush1.msra.mxu0 0.0
    %599 = vmatprep.subr.mxu0 0.0
    %600 = vmatpush1.msra.mxu0 0.0
    %601 = vmatprep.subr.mxu0 0.0
    %602 = vmatpush1.msra.mxu0 0.0
    %603 = vmatprep.subr.mxu0 0.0
    %604 = vmatpush1.msra.mxu0 0.0
    %605 = vmatprep.subr.mxu0 0.0
    %606 = vmatpush1.msra.mxu0 0.0
    %607 = vmatprep.subr.mxu0 0.0
    %608 = vmatpush1.msra.mxu0 0.0
    %609 = vmatprep.subr.mxu0 0.0
    %610 = vmatpush1.msra.mxu0 0.0
    %611 = vmatprep.subr.mxu0 0.0
    %612 = vmatpush1.msra.mxu0 0.0
    %613 = vmatprep.subr.mxu0 0.0
    %614 = vmatpush1.msra.mxu0 0.0
    %615 = vmatprep.subr.mxu0 0.0
    %616 = vmatpush1.msra.mxu0 0.0
    %617 = vmatprep.subr.mxu0 0.0
    %618 = vmatpush1.msra.mxu0 0.0
    %619 = vmatprep.subr.mxu0 0.0
    %620 = vmatpush1.msra.mxu0 0.0
    %621 = vmatprep.subr.mxu0 0.0
    %622 = vmatpush1.msra.mxu0 0.0
    %623 = vmatprep.subr.mxu0 0.0
    %624 = vmatpush1.msra.mxu0 0.0
    %625 = vmatprep.subr.mxu0 0.0
    %626 = vmatpush1.msra.mxu0 0.0
    %627 = vmatprep.subr.mxu0 0.0
    %628 = vmatpush1.msra.mxu0 0.0
    %629 = vmatprep.subr.mxu0 0.0
    %630 = vmatpush1.msra.mxu0 0.0
    %631 = vmatprep.subr.mxu0 0.0
    %632 = vmatpush1.msra.mxu0 0.0
    %633 = vmatprep.subr.mxu0 0.0
    %634 = vmatpush1.msra.mxu0 0.0
    %635 = vmatprep.mubr.f32.mxu0 0.0
    %636 = vmatmul.mubr.f32.gmra.mrb[0].mxu0 %v569
    %v637 = vpop.f32.mrb[0].mxu0
    %v638 = vadd.f32 0.0, %v637
    %v639 = vpop.f32.mrb[0].mxu0
    %640 = vdwg.mxu0
    %v641 = vadd.f32 %v568, %v638
    %v642 = vxor.u32 %v641, 2147483648
    %v643 = vmul.f32 %v642, 1.442695
    %v644 = vpow.pop %v643
    %v645 = vadd.f32 %v644, 1.0
    %v646 = vrcp.pop %v645
    %v647 = vmul.f32 1.0, %v646
    %v648 = vtanh.pop %v641
    %v649 = vmul.f32 %v647, %v556
    %651 = vrot.lane.b32.xlu0 %v648, 32
    %v652 = vpop.permute.xlu0 %651
    %v654 = vmul.f32 %v647, %v652
    %656 = vrot.lane.b32.xlu0 %v654, 32
    %v657 = vpop.permute.xlu0 %656
    %v659 = vadd.f32 %v649, %v657
    %v660 = vtanh.pop %v659
    %662 = vrot.lane.b32.xlu0 %v660, 32
    %v663 = vpop.permute.xlu0 %662
    %v665 = vmul.f32 %v647, %v663
    %667 = vrot.lane.b32.xlu0 %v665, 64
    %v668 = vpop.permute.xlu0 %667
    %670 = vst.msk [vmem:[#allocation3 + $0x18] sm:$0xff] %vm254, %v668
    %v671 = vld [vmem:[#allocation2 + $0x20] sm:$0xff]
    %v672 = vsel %vm254, %v668, 0
    %674 = vmatprep.subr.mxu0 0.0
    %675 = vmatpush1.msra.mxu0 %v93
    %676 = vmatprep.subr.mxu0 0.0
    %677 = vmatpush1.msra.mxu0 %v94
    %678 = vmatprep.subr.mxu0 0.0
    %679 = vmatpush1.msra.mxu0 %v95
    %680 = vmatprep.subr.mxu0 0.0
    %681 = vmatpush1.msra.mxu0 %v96
    %682 = vmatprep.subr.mxu0 0.0
    %683 = vmatpush1.msra.mxu0 0.0
    %684 = vmatprep.subr.mxu0 0.0
    %685 = vmatpush1.msra.mxu0 0.0
    %686 = vmatprep.subr.mxu0 0.0
    %687 = vmatpush1.msra.mxu0 0.0
    %688 = vmatprep.subr.mxu0 0.0
    %689 = vmatpush1.msra.mxu0 0.0
    %690 = vmatprep.subr.mxu0 0.0
    %691 = vmatpush1.msra.mxu0 0.0
    %692 = vmatprep.subr.mxu0 0.0
    %693 = vmatpush1.msra.mxu0 0.0
    %694 = vmatprep.subr.mxu0 0.0
    %695 = vmatpush1.msra.mxu0 0.0
    %696 = vmatprep.subr.mxu0 0.0
    %697 = vmatpush1.msra.mxu0 0.0
    %698 = vmatprep.subr.mxu0 0.0
    %699 = vmatpush1.msra.mxu0 0.0
    %700 = vmatprep.subr.mxu0 0.0
    %701 = vmatpush1.msra.mxu0 0.0
    %702 = vmatprep.subr.mxu0 0.0
    %703 = vmatpush1.msra.mxu0 0.0
    %704 = vmatprep.subr.mxu0 0.0
    %705 = vmatpush1.msra.mxu0 0.0
    %706 = vmatprep.subr.mxu0 0.0
    %707 = vmatpush1.msra.mxu0 0.0
    %708 = vmatprep.subr.mxu0 0.0
    %709 = vmatpush1.msra.mxu0 0.0
    %710 = vmatprep.subr.mxu0 0.0
    %711 = vmatpush1.msra.mxu0 0.0
    %712 = vmatprep.subr.mxu0 0.0
    %713 = vmatpush1.msra.mxu0 0.0
    %714 = vmatprep.subr.mxu0 0.0
    %715 = vmatpush1.msra.mxu0 0.0
    %716 = vmatprep.subr.mxu0 0.0
    %717 = vmatpush1.msra.mxu0 0.0
    %718 = vmatprep.subr.mxu0 0.0
    %719 = vmatpush1.msra.mxu0 0.0
    %720 = vmatprep.subr.mxu0 0.0
    %721 = vmatpush1.msra.mxu0 0.0
    %722 = vmatprep.subr.mxu0 0.0
    %723 = vmatpush1.msra.mxu0 0.0
    %724 = vmatprep.subr.mxu0 0.0
    %725 = vmatpush1.msra.mxu0 0.0
    %726 = vmatprep.subr.mxu0 0.0
    %727 = vmatpush1.msra.mxu0 0.0
    %728 = vmatprep.subr.mxu0 0.0
    %729 = vmatpush1.msra.mxu0 0.0
    %730 = vmatprep.subr.mxu0 0.0
    %731 = vmatpush1.msra.mxu0 0.0
    %732 = vmatprep.subr.mxu0 0.0
    %733 = vmatpush1.msra.mxu0 0.0
    %734 = vmatprep.subr.mxu0 0.0
    %735 = vmatpush1.msra.mxu0 0.0
    %736 = vmatprep.subr.mxu0 0.0
    %737 = vmatpush1.msra.mxu0 0.0
    %738 = vmatprep.mubr.f32.mxu0 0.0
    %739 = vmatmul.mubr.f32.gmra.mrb[0].mxu0 %v672
    %v740 = vpop.f32.mrb[0].mxu0
    %v741 = vadd.f32 0.0, %v740
    %v742 = vpop.f32.mrb[0].mxu0
    %743 = vdwg.mxu0
    %v744 = vadd.f32 %v671, %v741
    %v745 = vxor.u32 %v744, 2147483648
    %v746 = vmul.f32 %v745, 1.442695
    %v747 = vpow.pop %v746
    %v748 = vadd.f32 %v747, 1.0
    %v749 = vrcp.pop %v748
    %v750 = vmul.f32 1.0, %v749
    %v751 = vtanh.pop %v744
    %v752 = vmul.f32 %v750, %v659
    %754 = vrot.lane.b32.xlu0 %v751, 32
    %v755 = vpop.permute.xlu0 %754
    %v757 = vmul.f32 %v750, %v755
    %759 = vrot.lane.b32.xlu0 %v757, 32
    %v760 = vpop.permute.xlu0 %759
    %v762 = vadd.f32 %v752, %v760
    %v763 = vtanh.pop %v762
    %765 = vrot.lane.b32.xlu0 %v763, 32
    %v766 = vpop.permute.xlu0 %765
    %v768 = vmul.f32 %v750, %v766
    %770 = vrot.lane.b32.xlu0 %v768, 64
    %v771 = vpop.permute.xlu0 %770
    %773 = vst.msk [vmem:[#allocation3 + $0x20] sm:$0xff] %vm254, %v771
    %v774 = vld [vmem:[#allocation2 + $0x28] sm:$0xff]
    %v775 = vsel %vm254, %v771, 0
    %777 = vmatprep.subr.mxu0 0.0
    %778 = vmatpush1.msra.mxu0 %v93
    %779 = vmatprep.subr.mxu0 0.0
    %780 = vmatpush1.msra.mxu0 %v94
    %781 = vmatprep.subr.mxu0 0.0
    %782 = vmatpush1.msra.mxu0 %v95
    %783 = vmatprep.subr.mxu0 0.0
    %784 = vmatpush1.msra.mxu0 %v96
    %785 = vmatprep.subr.mxu0 0.0
    %786 = vmatpush1.msra.mxu0 0.0
    %787 = vmatprep.subr.mxu0 0.0
    %788 = vmatpush1.msra.mxu0 0.0
    %789 = vmatprep.subr.mxu0 0.0
    %790 = vmatpush1.msra.mxu0 0.0
    %791 = vmatprep.subr.mxu0 0.0
    %792 = vmatpush1.msra.mxu0 0.0
    %793 = vmatprep.subr.mxu0 0.0
    %794 = vmatpush1.msra.mxu0 0.0
    %795 = vmatprep.subr.mxu0 0.0
    %796 = vmatpush1.msra.mxu0 0.0
    %797 = vmatprep.subr.mxu0 0.0
    %798 = vmatpush1.msra.mxu0 0.0
    %799 = vmatprep.subr.mxu0 0.0
    %800 = vmatpush1.msra.mxu0 0.0
    %801 = vmatprep.subr.mxu0 0.0
    %802 = vmatpush1.msra.mxu0 0.0
    %803 = vmatprep.subr.mxu0 0.0
    %804 = vmatpush1.msra.mxu0 0.0
    %805 = vmatprep.subr.mxu0 0.0
    %806 = vmatpush1.msra.mxu0 0.0
    %807 = vmatprep.subr.mxu0 0.0
    %808 = vmatpush1.msra.mxu0 0.0
    %809 = vmatprep.subr.mxu0 0.0
    %810 = vmatpush1.msra.mxu0 0.0
    %811 = vmatprep.subr.mxu0 0.0
    %812 = vmatpush1.msra.mxu0 0.0
    %813 = vmatprep.subr.mxu0 0.0
    %814 = vmatpush1.msra.mxu0 0.0
    %815 = vmatprep.subr.mxu0 0.0
    %816 = vmatpush1.msra.mxu0 0.0
    %817 = vmatprep.subr.mxu0 0.0
    %818 = vmatpush1.msra.mxu0 0.0
    %819 = vmatprep.subr.mxu0 0.0
    %820 = vmatpush1.msra.mxu0 0.0
    %821 = vmatprep.subr.mxu0 0.0
    %822 = vmatpush1.msra.mxu0 0.0
    %823 = vmatprep.subr.mxu0 0.0
    %824 = vmatpush1.msra.mxu0 0.0
    %825 = vmatprep.subr.mxu0 0.0
    %826 = vmatpush1.msra.mxu0 0.0
    %827 = vmatprep.subr.mxu0 0.0
    %828 = vmatpush1.msra.mxu0 0.0
    %829 = vmatprep.subr.mxu0 0.0
    %830 = vmatpush1.msra.mxu0 0.0
    %831 = vmatprep.subr.mxu0 0.0
    %832 = vmatpush1.msra.mxu0 0.0
    %833 = vmatprep.subr.mxu0 0.0
    %834 = vmatpush1.msra.mxu0 0.0
    %835 = vmatprep.subr.mxu0 0.0
    %836 = vmatpush1.msra.mxu0 0.0
    %837 = vmatprep.subr.mxu0 0.0
    %838 = vmatpush1.msra.mxu0 0.0
    %839 = vmatprep.subr.mxu0 0.0
    %840 = vmatpush1.msra.mxu0 0.0
    %841 = vmatprep.mubr.f32.mxu0 0.0
    %842 = vmatmul.mubr.f32.gmra.mrb[0].mxu0 %v775
    %v843 = vpop.f32.mrb[0].mxu0
    %v844 = vadd.f32 0.0, %v843
    %v845 = vpop.f32.mrb[0].mxu0
    %846 = vdwg.mxu0
    %v847 = vadd.f32 %v774, %v844
    %v848 = vxor.u32 %v847, 2147483648
    %v849 = vmul.f32 %v848, 1.442695
    %v850 = vpow.pop %v849
    %v851 = vadd.f32 %v850, 1.0
    %v852 = vrcp.pop %v851
    %v853 = vmul.f32 1.0, %v852
    %v854 = vtanh.pop %v847
    %v855 = vmul.f32 %v853, %v762
    %857 = vrot.lane.b32.xlu0 %v854, 32
    %v858 = vpop.permute.xlu0 %857
    %v860 = vmul.f32 %v853, %v858
    %862 = vrot.lane.b32.xlu0 %v860, 32
    %v863 = vpop.permute.xlu0 %862
    %v865 = vadd.f32 %v855, %v863
    %v866 = vtanh.pop %v865
    %868 = vrot.lane.b32.xlu0 %v866, 32
    %v869 = vpop.permute.xlu0 %868
    %v871 = vmul.f32 %v853, %v869
    %873 = vrot.lane.b32.xlu0 %v871, 64
    %v874 = vpop.permute.xlu0 %873
    %876 = vst.msk [vmem:[#allocation3 + $0x28] sm:$0xff] %vm254, %v874
    %v877 = vld [vmem:[#allocation2 + $0x30] sm:$0xff]
    %v878 = vsel %vm254, %v874, 0
    %880 = vmatprep.subr.mxu0 0.0
    %881 = vmatpush1.msra.mxu0 %v93
    %882 = vmatprep.subr.mxu0 0.0
    %883 = vmatpush1.msra.mxu0 %v94
    %884 = vmatprep.subr.mxu0 0.0
    %885 = vmatpush1.msra.mxu0 %v95
    %886 = vmatprep.subr.mxu0 0.0
    %887 = vmatpush1.msra.mxu0 %v96
    %888 = vmatprep.subr.mxu0 0.0
    %889 = vmatpush1.msra.mxu0 0.0
    %890 = vmatprep.subr.mxu0 0.0
    %891 = vmatpush1.msra.mxu0 0.0
    %892 = vmatprep.subr.mxu0 0.0
    %893 = vmatpush1.msra.mxu0 0.0
    %894 = vmatprep.subr.mxu0 0.0
    %895 = vmatpush1.msra.mxu0 0.0
    %896 = vmatprep.subr.mxu0 0.0
    %897 = vmatpush1.msra.mxu0 0.0
    %898 = vmatprep.subr.mxu0 0.0
    %899 = vmatpush1.msra.mxu0 0.0
    %900 = vmatprep.subr.mxu0 0.0
    %901 = vmatpush1.msra.mxu0 0.0
    %902 = vmatprep.subr.mxu0 0.0
    %903 = vmatpush1.msra.mxu0 0.0
    %904 = vmatprep.subr.mxu0 0.0
    %905 = vmatpush1.msra.mxu0 0.0
    %906 = vmatprep.subr.mxu0 0.0
    %907 = vmatpush1.msra.mxu0 0.0
    %908 = vmatprep.subr.mxu0 0.0
    %909 = vmatpush1.msra.mxu0 0.0
    %910 = vmatprep.subr.mxu0 0.0
    %911 = vmatpush1.msra.mxu0 0.0
    %912 = vmatprep.subr.mxu0 0.0
    %913 = vmatpush1.msra.mxu0 0.0
    %914 = vmatprep.subr.mxu0 0.0
    %915 = vmatpush1.msra.mxu0 0.0
    %916 = vmatprep.subr.mxu0 0.0
    %917 = vmatpush1.msra.mxu0 0.0
    %918 = vmatprep.subr.mxu0 0.0
    %919 = vmatpush1.msra.mxu0 0.0
    %920 = vmatprep.subr.mxu0 0.0
    %921 = vmatpush1.msra.mxu0 0.0
    %922 = vmatprep.subr.mxu0 0.0
    %923 = vmatpush1.msra.mxu0 0.0
    %924 = vmatprep.subr.mxu0 0.0
    %925 = vmatpush1.msra.mxu0 0.0
    %926 = vmatprep.subr.mxu0 0.0
    %927 = vmatpush1.msra.mxu0 0.0
    %928 = vmatprep.subr.mxu0 0.0
    %929 = vmatpush1.msra.mxu0 0.0
    %930 = vmatprep.subr.mxu0 0.0
    %931 = vmatpush1.msra.mxu0 0.0
    %932 = vmatprep.subr.mxu0 0.0
    %933 = vmatpush1.msra.mxu0 0.0
    %934 = vmatprep.subr.mxu0 0.0
    %935 = vmatpush1.msra.mxu0 0.0
    %936 = vmatprep.subr.mxu0 0.0
    %937 = vmatpush1.msra.mxu0 0.0
    %938 = vmatprep.subr.mxu0 0.0
    %939 = vmatpush1.msra.mxu0 0.0
    %940 = vmatprep.subr.mxu0 0.0
    %941 = vmatpush1.msra.mxu0 0.0
    %942 = vmatprep.subr.mxu0 0.0
    %943 = vmatpush1.msra.mxu0 0.0
    %944 = vmatprep.mubr.f32.mxu0 0.0
    %945 = vmatmul.mubr.f32.gmra.mrb[0].mxu0 %v878
    %v946 = vpop.f32.mrb[0].mxu0
    %v947 = vadd.f32 0.0, %v946
    %v948 = vpop.f32.mrb[0].mxu0
    %949 = vdwg.mxu0
    %v950 = vadd.f32 %v877, %v947
    %v951 = vxor.u32 %v950, 2147483648
    %v952 = vmul.f32 %v951, 1.442695
    %v953 = vpow.pop %v952
    %v954 = vadd.f32 %v953, 1.0
    %v955 = vrcp.pop %v954
    %v956 = vmul.f32 1.0, %v955
    %v957 = vtanh.pop %v950
    %v958 = vmul.f32 %v956, %v865
    %960 = vrot.lane.b32.xlu0 %v957, 32
    %v961 = vpop.permute.xlu0 %960
    %v963 = vmul.f32 %v956, %v961
    %965 = vrot.lane.b32.xlu0 %v963, 32
    %v966 = vpop.permute.xlu0 %965
    %v968 = vadd.f32 %v958, %v966
    %v969 = vtanh.pop %v968
    %971 = vrot.lane.b32.xlu0 %v969, 32
    %v972 = vpop.permute.xlu0 %971
    %v974 = vmul.f32 %v956, %v972
    %976 = vrot.lane.b32.xlu0 %v974, 64
    %v977 = vpop.permute.xlu0 %976
    %979 = vst.msk [vmem:[#allocation3 + $0x30] sm:$0xff] %vm254, %v977
    %v980 = vld [vmem:[#allocation2 + $0x38] sm:$0xff]
    %v981 = vsel %vm254, %v977, 0
    %983 = vmatprep.subr.mxu0 0.0
    %984 = vmatpush1.msra.mxu0 %v93
    %985 = vmatprep.subr.mxu0 0.0
    %986 = vmatpush1.msra.mxu0 %v94
    %987 = vmatprep.subr.mxu0 0.0
    %988 = vmatpush1.msra.mxu0 %v95
    %989 = vmatprep.subr.mxu0 0.0
    %990 = vmatpush1.msra.mxu0 %v96
    %991 = vmatprep.subr.mxu0 0.0
    %992 = vmatpush1.msra.mxu0 0.0
    %993 = vmatprep.subr.mxu0 0.0
    %994 = vmatpush1.msra.mxu0 0.0
    %995 = vmatprep.subr.mxu0 0.0
    %996 = vmatpush1.msra.mxu0 0.0
    %997 = vmatprep.subr.mxu0 0.0
    %998 = vmatpush1.msra.mxu0 0.0
    %999 = vmatprep.subr.mxu0 0.0
    %1000 = vmatpush1.msra.mxu0 0.0
    %1001 = vmatprep.subr.mxu0 0.0
    %1002 = vmatpush1.msra.mxu0 0.0
    %1003 = vmatprep.subr.mxu0 0.0
    %1004 = vmatpush1.msra.mxu0 0.0
    %1005 = vmatprep.subr.mxu0 0.0
    %1006 = vmatpush1.msra.mxu0 0.0
    %1007 = vmatprep.subr.mxu0 0.0
    %1008 = vmatpush1.msra.mxu0 0.0
    %1009 = vmatprep.subr.mxu0 0.0
    %1010 = vmatpush1.msra.mxu0 0.0
    %1011 = vmatprep.subr.mxu0 0.0
    %1012 = vmatpush1.msra.mxu0 0.0
    %1013 = vmatprep.subr.mxu0 0.0
    %1014 = vmatpush1.msra.mxu0 0.0
    %1015 = vmatprep.subr.mxu0 0.0
    %1016 = vmatpush1.msra.mxu0 0.0
    %1017 = vmatprep.subr.mxu0 0.0
    %1018 = vmatpush1.msra.mxu0 0.0
    %1019 = vmatprep.subr.mxu0 0.0
    %1020 = vmatpush1.msra.mxu0 0.0
    %1021 = vmatprep.subr.mxu0 0.0
    %1022 = vmatpush1.msra.mxu0 0.0
    %1023 = vmatprep.subr.mxu0 0.0
    %1024 = vmatpush1.msra.mxu0 0.0
    %1025 = vmatprep.subr.mxu0 0.0
    %1026 = vmatpush1.msra.mxu0 0.0
    %1027 = vmatprep.subr.mxu0 0.0
    %1028 = vmatpush1.msra.mxu0 0.0
    %1029 = vmatprep.subr.mxu0 0.0
    %1030 = vmatpush1.msra.mxu0 0.0
    %1031 = vmatprep.subr.mxu0 0.0
    %1032 = vmatpush1.msra.mxu0 0.0
    %1033 = vmatprep.subr.mxu0 0.0
    %1034 = vmatpush1.msra.mxu0 0.0
    %1035 = vmatprep.subr.mxu0 0.0
    %1036 = vmatpush1.msra.mxu0 0.0
    %1037 = vmatprep.subr.mxu0 0.0
    %1038 = vmatpush1.msra.mxu0 0.0
    %1039 = vmatprep.subr.mxu0 0.0
    %1040 = vmatpush1.msra.mxu0 0.0
    %1041 = vmatprep.subr.mxu0 0.0
    %1042 = vmatpush1.msra.mxu0 0.0
    %1043 = vmatprep.subr.mxu0 0.0
    %1044 = vmatpush1.msra.mxu0 0.0
    %1045 = vmatprep.subr.mxu0 0.0
    %1046 = vmatpush1.msra.mxu0 0.0
    %1047 = vmatprep.mubr.f32.mxu0 0.0
    %1048 = vmatmul.mubr.f32.gmra.mrb[0].mxu0 %v981
    %v1049 = vpop.f32.mrb[0].mxu0
    %v1050 = vadd.f32 0.0, %v1049
    %v1051 = vpop.f32.mrb[0].mxu0
    %1052 = vdwg.mxu0
    %v1053 = vadd.f32 %v980, %v1050
    %v1054 = vxor.u32 %v1053, 2147483648
    %v1055 = vmul.f32 %v1054, 1.442695
    %v1056 = vpow.pop %v1055
    %v1057 = vadd.f32 %v1056, 1.0
    %v1058 = vrcp.pop %v1057
    %v1059 = vmul.f32 1.0, %v1058
    %v1060 = vtanh.pop %v1053
    %v1061 = vmul.f32 %v1059, %v968
    %1063 = vrot.lane.b32.xlu0 %v1060, 32
    %v1064 = vpop.permute.xlu0 %1063
    %v1066 = vmul.f32 %v1059, %v1064
    %1068 = vrot.lane.b32.xlu0 %v1066, 32
    %v1069 = vpop.permute.xlu0 %1068
    %v1071 = vadd.f32 %v1061, %v1069
    %v1072 = vtanh.pop %v1071
    %1074 = vrot.lane.b32.xlu0 %v1072, 32
    %v1075 = vpop.permute.xlu0 %1074
    %v1077 = vmul.f32 %v1059, %v1075
    %1079 = vrot.lane.b32.xlu0 %v1077, 64
    %v1080 = vpop.permute.xlu0 %1079
    %1082 = vst.msk [vmem:[#allocation3 + $0x38] sm:$0xff] %vm254, %v1080
    %1083 = vst.msk [vmem:[#allocation13] sm:$0xff] %vm254, %v1080
    %1085 = vrot.lane.b32.xlu0 %v1071, 96
    %v1086 = vpop.permute.xlu0 %1085
    %1088 = vst.msk [vmem:[#allocation15] sm:$0xff] %vm254, %v1086
    %s1089 = scalar_lea.vmem %s6, 1
    %v1090 = vld [vmem:[%s1089] sm:$0x1]
    %s1091 = scalar_lea.vmem %s5, 32
    %v1092 = vld [vmem:[%s1091] sm:$0xff]
    %v1093 = vld [vmem:[%s1091 + $0x8] sm:$0xff]
    %v1094 = vld [vmem:[%s1091 + $0x10] sm:$0xff]
    %v1095 = vld [vmem:[%s1091 + $0x18] sm:$0xff]
    %v1096 = vld [vmem:[#allocation3] sm:$0xff]
    %v1097 = vld [vmem:[#allocation3 + $0x8] sm:$0xff]
    %v1098 = vld [vmem:[#allocation3 + $0x10] sm:$0xff]
    %v1099 = vld [vmem:[#allocation3 + $0x18] sm:$0xff]
    %v1100 = vld [vmem:[#allocation3 + $0x20] sm:$0xff]
    %v1101 = vld [vmem:[#allocation3 + $0x28] sm:$0xff]
    %v1102 = vld [vmem:[#allocation3 + $0x30] sm:$0xff]
    %v1103 = vld [vmem:[#allocation3 + $0x38] sm:$0xff]
    %v1104 = vld [vmem:[%s4] sm:$0xff]
    %v1105 = vld [vmem:[%s4 + $0x8] sm:$0xff]
    %v1106 = vld [vmem:[%s4 + $0x10] sm:$0xff]
    %v1107 = vld [vmem:[%s4 + $0x18] sm:$0xff]
    %v1109 = vlaneseq
    %v1110 = vshrl.u32 %v1109, 7
    %v1111 = vsub.s32 0, %v1110
    %v1112 = vrot.slane %v1090, %v1111
    %v1115 = vsel %vm254, %v1096, 0
    %v1118 = vsel %vm254, %v1097, 0
    %v1121 = vsel %vm254, %v1098, 0
    %v1124 = vsel %vm254, %v1099, 0
    %v1127 = vsel %vm254, %v1100, 0
    %v1130 = vsel %vm254, %v1101, 0
    %v1133 = vsel %vm254, %v1102, 0
    %v1136 = vsel %vm254, %v1103, 0
    %1138 = vmatprep.subr.mxu0 0.0
    %1139 = vmatpush1.msra.mxu0 %v1104
    %1140 = vmatprep.subr.mxu0 0.0
    %1141 = vmatpush1.msra.mxu0 %v1105
    %1142 = vmatprep.subr.mxu0 0.0
    %1143 = vmatpush1.msra.mxu0 %v1106
    %1144 = vmatprep.subr.mxu0 0.0
    %1145 = vmatpush1.msra.mxu0 %v1107
    %1146 = vmatprep.subr.mxu0 0.0
    %1147 = vmatpush1.msra.mxu0 0.0
    %1148 = vmatprep.subr.mxu0 0.0
    %1149 = vmatpush1.msra.mxu0 0.0
    %1150 = vmatprep.subr.mxu0 0.0
    %1151 = vmatpush1.msra.mxu0 0.0
    %1152 = vmatprep.subr.mxu0 0.0
    %1153 = vmatpush1.msra.mxu0 0.0
    %1154 = vmatprep.subr.mxu0 0.0
    %1155 = vmatpush1.msra.mxu0 0.0
    %1156 = vmatprep.subr.mxu0 0.0
    %1157 = vmatpush1.msra.mxu0 0.0
    %1158 = vmatprep.subr.mxu0 0.0
    %1159 = vmatpush1.msra.mxu0 0.0
    %1160 = vmatprep.subr.mxu0 0.0
    %1161 = vmatpush1.msra.mxu0 0.0
    %1162 = vmatprep.subr.mxu0 0.0
    %1163 = vmatpush1.msra.mxu0 0.0
    %1164 = vmatprep.subr.mxu0 0.0
    %1165 = vmatpush1.msra.mxu0 0.0
    %1166 = vmatprep.subr.mxu0 0.0
    %1167 = vmatpush1.msra.mxu0 0.0
    %1168 = vmatprep.subr.mxu0 0.0
    %1169 = vmatpush1.msra.mxu0 0.0
    %1170 = vmatprep.subr.mxu0 0.0
    %1171 = vmatpush1.msra.mxu0 0.0
    %1172 = vmatprep.subr.mxu0 0.0
    %1173 = vmatpush1.msra.mxu0 0.0
    %1174 = vmatprep.subr.mxu0 0.0
    %1175 = vmatpush1.msra.mxu0 0.0
    %1176 = vmatprep.subr.mxu0 0.0
    %1177 = vmatpush1.msra.mxu0 0.0
    %1178 = vmatprep.subr.mxu0 0.0
    %1179 = vmatpush1.msra.mxu0 0.0
    %1180 = vmatprep.subr.mxu0 0.0
    %1181 = vmatpush1.msra.mxu0 0.0
    %1182 = vmatprep.subr.mxu0 0.0
    %1183 = vmatpush1.msra.mxu0 0.0
    %1184 = vmatprep.subr.mxu0 0.0
    %1185 = vmatpush1.msra.mxu0 0.0
    %1186 = vmatprep.subr.mxu0 0.0
    %1187 = vmatpush1.msra.mxu0 0.0
    %1188 = vmatprep.subr.mxu0 0.0
    %1189 = vmatpush1.msra.mxu0 0.0
    %1190 = vmatprep.subr.mxu0 0.0
    %1191 = vmatpush1.msra.mxu0 0.0
    %1192 = vmatprep.subr.mxu0 0.0
    %1193 = vmatpush1.msra.mxu0 0.0
    %1194 = vmatprep.subr.mxu0 0.0
    %1195 = vmatpush1.msra.mxu0 0.0
    %1196 = vmatprep.subr.mxu0 0.0
    %1197 = vmatpush1.msra.mxu0 0.0
    %1198 = vmatprep.subr.mxu0 0.0
    %1199 = vmatpush1.msra.mxu0 0.0
    %1200 = vmatprep.subr.mxu0 0.0
    %1201 = vmatpush1.msra.mxu0 0.0
    %1202 = vmatprep.mubr.f32.mxu0 0.0
    %1203 = vmatmul.mubr.f32.gmra.mrb[0].mxu0 %v1115
    %v1204 = vpop.f32.mrb[0].mxu0
    %v1205 = vadd.f32 %v1112, %v1204
    %v1206 = vpop.f32.mrb[0].mxu0
    %1207 = vmatprep.mubr.f32.mxu0 0.0
    %1208 = vmatmul.mubr.f32.gmra.mrb[0].mxu0 %v1118
    %v1209 = vpop.f32.mrb[0].mxu0
    %v1210 = vadd.f32 %v1112, %v1209
    %v1211 = vpop.f32.mrb[0].mxu0
    %1212 = vmatprep.mubr.f32.mxu0 0.0
    %1213 = vmatmul.mubr.f32.gmra.mrb[0].mxu0 %v1121
    %v1214 = vpop.f32.mrb[0].mxu0
    %v1215 = vadd.f32 %v1112, %v1214
    %v1216 = vpop.f32.mrb[0].mxu0
    %1217 = vmatprep.mubr.f32.mxu0 0.0
    %1218 = vmatmul.mubr.f32.gmra.mrb[0].mxu0 %v1124
    %v1219 = vpop.f32.mrb[0].mxu0
    %v1220 = vadd.f32 %v1112, %v1219
    %v1221 = vpop.f32.mrb[0].mxu0
    %1222 = vmatprep.mubr.f32.mxu0 0.0
    %1223 = vmatmul.mubr.f32.gmra.mrb[0].mxu0 %v1127
    %v1224 = vpop.f32.mrb[0].mxu0
    %v1225 = vadd.f32 %v1112, %v1224
    %v1226 = vpop.f32.mrb[0].mxu0
    %1227 = vmatprep.mubr.f32.mxu0 0.0
    %1228 = vmatmul.mubr.f32.gmra.mrb[0].mxu0 %v1130
    %v1229 = vpop.f32.mrb[0].mxu0
    %v1230 = vadd.f32 %v1112, %v1229
    %v1231 = vpop.f32.mrb[0].mxu0
    %1232 = vmatprep.mubr.f32.mxu0 0.0
    %1233 = vmatmul.mubr.f32.gmra.mrb[0].mxu0 %v1133
    %v1234 = vpop.f32.mrb[0].mxu0
    %v1235 = vadd.f32 %v1112, %v1234
    %v1236 = vpop.f32.mrb[0].mxu0
    %1237 = vmatprep.mubr.f32.mxu0 0.0
    %1238 = vmatmul.mubr.f32.gmra.mrb[0].mxu0 %v1136
    %v1239 = vpop.f32.mrb[0].mxu0
    %v1240 = vadd.f32 %v1112, %v1239
    %v1241 = vpop.f32.mrb[0].mxu0
    %1242 = vdwg.mxu0
    %1243 = vst [vmem:[#allocation2] sm:$0xff] %v1205
    %1244 = vst [vmem:[#allocation2 + $0x8] sm:$0xff] %v1210
    %1245 = vst [vmem:[#allocation2 + $0x10] sm:$0xff] %v1215
    %1246 = vst [vmem:[#allocation2 + $0x18] sm:$0xff] %v1220
    %1247 = vst [vmem:[#allocation2 + $0x20] sm:$0xff] %v1225
    %1248 = vst [vmem:[#allocation2 + $0x28] sm:$0xff] %v1230
    %1249 = vst [vmem:[#allocation2 + $0x30] sm:$0xff] %v1235
    %1250 = vst [vmem:[#allocation2 + $0x38] sm:$0xff] %v1240
    %s1251 = scalar_lea.vmem [#allocation4], 8
    %v1252 = vld [vmem:[%s1251] sm:$0xff]
    %s1253 = scalar_lea.vmem [#allocation7], 8
    %v1254 = vld [vmem:[%s1253] sm:$0xff]
    %v1255 = vld [vmem:[#allocation2] sm:$0xff]
    %v1257 = vsel %vm254, %v1252, 0
    %1259 = vmatprep.subr.mxu0 0.0
    %1260 = vmatpush1.msra.mxu0 %v1092
    %1261 = vmatprep.subr.mxu0 0.0
    %1262 = vmatpush1.msra.mxu0 %v1093
    %1263 = vmatprep.subr.mxu0 0.0
    %1264 = vmatpush1.msra.mxu0 %v1094
    %1265 = vmatprep.subr.mxu0 0.0
    %1266 = vmatpush1.msra.mxu0 %v1095
    %1267 = vmatprep.subr.mxu0 0.0
    %1268 = vmatpush1.msra.mxu0 0.0
    %1269 = vmatprep.subr.mxu0 0.0
    %1270 = vmatpush1.msra.mxu0 0.0
    %1271 = vmatprep.subr.mxu0 0.0
    %1272 = vmatpush1.msra.mxu0 0.0
    %1273 = vmatprep.subr.mxu0 0.0
    %1274 = vmatpush1.msra.mxu0 0.0
    %1275 = vmatprep.subr.mxu0 0.0
    %1276 = vmatpush1.msra.mxu0 0.0
    %1277 = vmatprep.subr.mxu0 0.0
    %1278 = vmatpush1.msra.mxu0 0.0
    %1279 = vmatprep.subr.mxu0 0.0
    %1280 = vmatpush1.msra.mxu0 0.0
    %1281 = vmatprep.subr.mxu0 0.0
    %1282 = vmatpush1.msra.mxu0 0.0
    %1283 = vmatprep.subr.mxu0 0.0
    %1284 = vmatpush1.msra.mxu0 0.0
    %1285 = vmatprep.subr.mxu0 0.0
    %1286 = vmatpush1.msra.mxu0 0.0
    %1287 = vmatprep.subr.mxu0 0.0
    %1288 = vmatpush1.msra.mxu0 0.0
    %1289 = vmatprep.subr.mxu0 0.0
    %1290 = vmatpush1.msra.mxu0 0.0
    %1291 = vmatprep.subr.mxu0 0.0
    %1292 = vmatpush1.msra.mxu0 0.0
    %1293 = vmatprep.subr.mxu0 0.0
    %1294 = vmatpush1.msra.mxu0 0.0
    %1295 = vmatprep.subr.mxu0 0.0
    %1296 = vmatpush1.msra.mxu0 0.0
    %1297 = vmatprep.subr.mxu0 0.0
    %1298 = vmatpush1.msra.mxu0 0.0
    %1299 = vmatprep.subr.mxu0 0.0
    %1300 = vmatpush1.msra.mxu0 0.0
    %1301 = vmatprep.subr.mxu0 0.0
    %1302 = vmatpush1.msra.mxu0 0.0
    %1303 = vmatprep.subr.mxu0 0.0
    %1304 = vmatpush1.msra.mxu0 0.0
    %1305 = vmatprep.subr.mxu0 0.0
    %1306 = vmatpush1.msra.mxu0 0.0
    %1307 = vmatprep.subr.mxu0 0.0
    %1308 = vmatpush1.msra.mxu0 0.0
    %1309 = vmatprep.subr.mxu0 0.0
    %1310 = vmatpush1.msra.mxu0 0.0
    %1311 = vmatprep.subr.mxu0 0.0
    %1312 = vmatpush1.msra.mxu0 0.0
    %1313 = vmatprep.subr.mxu0 0.0
    %1314 = vmatpush1.msra.mxu0 0.0
    %1315 = vmatprep.subr.mxu0 0.0
    %1316 = vmatpush1.msra.mxu0 0.0
    %1317 = vmatprep.subr.mxu0 0.0
    %1318 = vmatpush1.msra.mxu0 0.0
    %1319 = vmatprep.subr.mxu0 0.0
    %1320 = vmatpush1.msra.mxu0 0.0
    %1321 = vmatprep.subr.mxu0 0.0
    %1322 = vmatpush1.msra.mxu0 0.0
    %1323 = vmatprep.mubr.f32.mxu0 0.0
    %1324 = vmatmul.mubr.f32.gmra.mrb[0].mxu0 %v1257
    %v1325 = vpop.f32.mrb[0].mxu0
    %v1326 = vadd.f32 0.0, %v1325
    %v1327 = vpop.f32.mrb[0].mxu0
    %1328 = vdwg.mxu0
    %v1329 = vadd.f32 %v1255, %v1326
    %v1330 = vxor.u32 %v1329, 2147483648
    %v1331 = vmul.f32 %v1330, 1.442695
    %v1332 = vpow.pop %v1331
    %v1333 = vadd.f32 %v1332, 1.0
    %v1334 = vrcp.pop %v1333
    %v1335 = vmul.f32 1.0, %v1334
    %v1336 = vtanh.pop %v1329
    %1338 = vrot.lane.b32.xlu0 %v1254, 32
    %v1339 = vpop.permute.xlu0 %1338
    %v1341 = vmul.f32 %v1335, %v1339
    %1343 = vrot.lane.b32.xlu0 %v1336, 32
    %v1344 = vpop.permute.xlu0 %1343
    %v1346 = vmul.f32 %v1335, %v1344
    %1348 = vrot.lane.b32.xlu0 %v1346, 32
    %v1349 = vpop.permute.xlu0 %1348
    %v1351 = vadd.f32 %v1341, %v1349
    %v1352 = vtanh.pop %v1351
    %1354 = vrot.lane.b32.xlu0 %v1352, 32
    %v1355 = vpop.permute.xlu0 %1354
    %v1357 = vmul.f32 %v1335, %v1355
    %1359 = vrot.lane.b32.xlu0 %v1357, 64
    %v1360 = vpop.permute.xlu0 %1359
    %1362 = vst.msk [vmem:[#allocation3] sm:$0xff] %vm254, %v1360
    %v1363 = vld [vmem:[#allocation2 + $0x8] sm:$0xff]
    %v1364 = vsel %vm254, %v1360, 0
    %1366 = vmatprep.subr.mxu0 0.0
    %1367 = vmatpush1.msra.mxu0 %v1092
    %1368 = vmatprep.subr.mxu0 0.0
    %1369 = vmatpush1.msra.mxu0 %v1093
    %1370 = vmatprep.subr.mxu0 0.0
    %1371 = vmatpush1.msra.mxu0 %v1094
    %1372 = vmatprep.subr.mxu0 0.0
    %1373 = vmatpush1.msra.mxu0 %v1095
    %1374 = vmatprep.subr.mxu0 0.0
    %1375 = vmatpush1.msra.mxu0 0.0
    %1376 = vmatprep.subr.mxu0 0.0
    %1377 = vmatpush1.msra.mxu0 0.0
    %1378 = vmatprep.subr.mxu0 0.0
    %1379 = vmatpush1.msra.mxu0 0.0
    %1380 = vmatprep.subr.mxu0 0.0
    %1381 = vmatpush1.msra.mxu0 0.0
    %1382 = vmatprep.subr.mxu0 0.0
    %1383 = vmatpush1.msra.mxu0 0.0
    %1384 = vmatprep.subr.mxu0 0.0
    %1385 = vmatpush1.msra.mxu0 0.0
    %1386 = vmatprep.subr.mxu0 0.0
    %1387 = vmatpush1.msra.mxu0 0.0
    %1388 = vmatprep.subr.mxu0 0.0
    %1389 = vmatpush1.msra.mxu0 0.0
    %1390 = vmatprep.subr.mxu0 0.0
    %1391 = vmatpush1.msra.mxu0 0.0
    %1392 = vmatprep.subr.mxu0 0.0
    %1393 = vmatpush1.msra.mxu0 0.0
    %1394 = vmatprep.subr.mxu0 0.0
    %1395 = vmatpush1.msra.mxu0 0.0
    %1396 = vmatprep.subr.mxu0 0.0
    %1397 = vmatpush1.msra.mxu0 0.0
    %1398 = vmatprep.subr.mxu0 0.0
    %1399 = vmatpush1.msra.mxu0 0.0
    %1400 = vmatprep.subr.mxu0 0.0
    %1401 = vmatpush1.msra.mxu0 0.0
    %1402 = vmatprep.subr.mxu0 0.0
    %1403 = vmatpush1.msra.mxu0 0.0
    %1404 = vmatprep.subr.mxu0 0.0
    %1405 = vmatpush1.msra.mxu0 0.0
    %1406 = vmatprep.subr.mxu0 0.0
    %1407 = vmatpush1.msra.mxu0 0.0
    %1408 = vmatprep.subr.mxu0 0.0
    %1409 = vmatpush1.msra.mxu0 0.0
    %1410 = vmatprep.subr.mxu0 0.0
    %1411 = vmatpush1.msra.mxu0 0.0
    %1412 = vmatprep.subr.mxu0 0.0
    %1413 = vmatpush1.msra.mxu0 0.0
    %1414 = vmatprep.subr.mxu0 0.0
    %1415 = vmatpush1.msra.mxu0 0.0
    %1416 = vmatprep.subr.mxu0 0.0
    %1417 = vmatpush1.msra.mxu0 0.0
    %1418 = vmatprep.subr.mxu0 0.0
    %1419 = vmatpush1.msra.mxu0 0.0
    %1420 = vmatprep.subr.mxu0 0.0
    %1421 = vmatpush1.msra.mxu0 0.0
    %1422 = vmatprep.subr.mxu0 0.0
    %1423 = vmatpush1.msra.mxu0 0.0
    %1424 = vmatprep.subr.mxu0 0.0
    %1425 = vmatpush1.msra.mxu0 0.0
    %1426 = vmatprep.subr.mxu0 0.0
    %1427 = vmatpush1.msra.mxu0 0.0
    %1428 = vmatprep.subr.mxu0 0.0
    %1429 = vmatpush1.msra.mxu0 0.0
    %1430 = vmatprep.mubr.f32.mxu0 0.0
    %1431 = vmatmul.mubr.f32.gmra.mrb[0].mxu0 %v1364
    %v1432 = vpop.f32.mrb[0].mxu0
    %v1433 = vadd.f32 0.0, %v1432
    %v1434 = vpop.f32.mrb[0].mxu0
    %1435 = vdwg.mxu0
    %v1436 = vadd.f32 %v1363, %v1433
    %v1437 = vxor.u32 %v1436, 2147483648
    %v1438 = vmul.f32 %v1437, 1.442695
    %v1439 = vpow.pop %v1438
    %v1440 = vadd.f32 %v1439, 1.0
    %v1441 = vrcp.pop %v1440
    %v1442 = vmul.f32 1.0, %v1441
    %v1443 = vtanh.pop %v1436
    %v1444 = vmul.f32 %v1442, %v1351
    %1446 = vrot.lane.b32.xlu0 %v1443, 32
    %v1447 = vpop.permute.xlu0 %1446
    %v1449 = vmul.f32 %v1442, %v1447
    %1451 = vrot.lane.b32.xlu0 %v1449, 32
    %v1452 = vpop.permute.xlu0 %1451
    %v1454 = vadd.f32 %v1444, %v1452
    %v1455 = vtanh.pop %v1454
    %1457 = vrot.lane.b32.xlu0 %v1455, 32
    %v1458 = vpop.permute.xlu0 %1457
    %v1460 = vmul.f32 %v1442, %v1458
    %1462 = vrot.lane.b32.xlu0 %v1460, 64
    %v1463 = vpop.permute.xlu0 %1462
    %1465 = vst.msk [vmem:[#allocation3 + $0x8] sm:$0xff] %vm254, %v1463
    %v1466 = vld [vmem:[#allocation2 + $0x10] sm:$0xff]
    %v1467 = vsel %vm254, %v1463, 0
    %1469 = vmatprep.subr.mxu0 0.0
    %1470 = vmatpush1.msra.mxu0 %v1092
    %1471 = vmatprep.subr.mxu0 0.0
    %1472 = vmatpush1.msra.mxu0 %v1093
    %1473 = vmatprep.subr.mxu0 0.0
    %1474 = vmatpush1.msra.mxu0 %v1094
    %1475 = vmatprep.subr.mxu0 0.0
    %1476 = vmatpush1.msra.mxu0 %v1095
    %1477 = vmatprep.subr.mxu0 0.0
    %1478 = vmatpush1.msra.mxu0 0.0
    %1479 = vmatprep.subr.mxu0 0.0
    %1480 = vmatpush1.msra.mxu0 0.0
    %1481 = vmatprep.subr.mxu0 0.0
    %1482 = vmatpush1.msra.mxu0 0.0
    %1483 = vmatprep.subr.mxu0 0.0
    %1484 = vmatpush1.msra.mxu0 0.0
    %1485 = vmatprep.subr.mxu0 0.0
    %1486 = vmatpush1.msra.mxu0 0.0
    %1487 = vmatprep.subr.mxu0 0.0
    %1488 = vmatpush1.msra.mxu0 0.0
    %1489 = vmatprep.subr.mxu0 0.0
    %1490 = vmatpush1.msra.mxu0 0.0
    %1491 = vmatprep.subr.mxu0 0.0
    %1492 = vmatpush1.msra.mxu0 0.0
    %1493 = vmatprep.subr.mxu0 0.0
    %1494 = vmatpush1.msra.mxu0 0.0
    %1495 = vmatprep.subr.mxu0 0.0
    %1496 = vmatpush1.msra.mxu0 0.0
    %1497 = vmatprep.subr.mxu0 0.0
    %1498 = vmatpush1.msra.mxu0 0.0
    %1499 = vmatprep.subr.mxu0 0.0
    %1500 = vmatpush1.msra.mxu0 0.0
    %1501 = vmatprep.subr.mxu0 0.0
    %1502 = vmatpush1.msra.mxu0 0.0
    %1503 = vmatprep.subr.mxu0 0.0
    %1504 = vmatpush1.msra.mxu0 0.0
    %1505 = vmatprep.subr.mxu0 0.0
    %1506 = vmatpush1.msra.mxu0 0.0
    %1507 = vmatprep.subr.mxu0 0.0
    %1508 = vmatpush1.msra.mxu0 0.0
    %1509 = vmatprep.subr.mxu0 0.0
    %1510 = vmatpush1.msra.mxu0 0.0
    %1511 = vmatprep.subr.mxu0 0.0
    %1512 = vmatpush1.msra.mxu0 0.0
    %1513 = vmatprep.subr.mxu0 0.0
    %1514 = vmatpush1.msra.mxu0 0.0
    %1515 = vmatprep.subr.mxu0 0.0
    %1516 = vmatpush1.msra.mxu0 0.0
    %1517 = vmatprep.subr.mxu0 0.0
    %1518 = vmatpush1.msra.mxu0 0.0
    %1519 = vmatprep.subr.mxu0 0.0
    %1520 = vmatpush1.msra.mxu0 0.0
    %1521 = vmatprep.subr.mxu0 0.0
    %1522 = vmatpush1.msra.mxu0 0.0
    %1523 = vmatprep.subr.mxu0 0.0
    %1524 = vmatpush1.msra.mxu0 0.0
    %1525 = vmatprep.subr.mxu0 0.0
    %1526 = vmatpush1.msra.mxu0 0.0
    %1527 = vmatprep.subr.mxu0 0.0
    %1528 = vmatpush1.msra.mxu0 0.0
    %1529 = vmatprep.subr.mxu0 0.0
    %1530 = vmatpush1.msra.mxu0 0.0
    %1531 = vmatprep.subr.mxu0 0.0
    %1532 = vmatpush1.msra.mxu0 0.0
    %1533 = vmatprep.mubr.f32.mxu0 0.0
    %1534 = vmatmul.mubr.f32.gmra.mrb[0].mxu0 %v1467
    %v1535 = vpop.f32.mrb[0].mxu0
    %v1536 = vadd.f32 0.0, %v1535
    %v1537 = vpop.f32.mrb[0].mxu0
    %1538 = vdwg.mxu0
    %v1539 = vadd.f32 %v1466, %v1536
    %v1540 = vxor.u32 %v1539, 2147483648
    %v1541 = vmul.f32 %v1540, 1.442695
    %v1542 = vpow.pop %v1541
    %v1543 = vadd.f32 %v1542, 1.0
    %v1544 = vrcp.pop %v1543
    %v1545 = vmul.f32 1.0, %v1544
    %v1546 = vtanh.pop %v1539
    %v1547 = vmul.f32 %v1545, %v1454
    %1549 = vrot.lane.b32.xlu0 %v1546, 32
    %v1550 = vpop.permute.xlu0 %1549
    %v1552 = vmul.f32 %v1545, %v1550
    %1554 = vrot.lane.b32.xlu0 %v1552, 32
    %v1555 = vpop.permute.xlu0 %1554
    %v1557 = vadd.f32 %v1547, %v1555
    %v1558 = vtanh.pop %v1557
    %1560 = vrot.lane.b32.xlu0 %v1558, 32
    %v1561 = vpop.permute.xlu0 %1560
    %v1563 = vmul.f32 %v1545, %v1561
    %1565 = vrot.lane.b32.xlu0 %v1563, 64
    %v1566 = vpop.permute.xlu0 %1565
    %1568 = vst.msk [vmem:[#allocation3 + $0x10] sm:$0xff] %vm254, %v1566
    %v1569 = vld [vmem:[#allocation2 + $0x18] sm:$0xff]
    %v1570 = vsel %vm254, %v1566, 0
    %1572 = vmatprep.subr.mxu0 0.0
    %1573 = vmatpush1.msra.mxu0 %v1092
    %1574 = vmatprep.subr.mxu0 0.0
    %1575 = vmatpush1.msra.mxu0 %v1093
    %1576 = vmatprep.subr.mxu0 0.0
    %1577 = vmatpush1.msra.mxu0 %v1094
    %1578 = vmatprep.subr.mxu0 0.0
    %1579 = vmatpush1.msra.mxu0 %v1095
    %1580 = vmatprep.subr.mxu0 0.0
    %1581 = vmatpush1.msra.mxu0 0.0
    %1582 = vmatprep.subr.mxu0 0.0
    %1583 = vmatpush1.msra.mxu0 0.0
    %1584 = vmatprep.subr.mxu0 0.0
    %1585 = vmatpush1.msra.mxu0 0.0
    %1586 = vmatprep.subr.mxu0 0.0
    %1587 = vmatpush1.msra.mxu0 0.0
    %1588 = vmatprep.subr.mxu0 0.0
    %1589 = vmatpush1.msra.mxu0 0.0
    %1590 = vmatprep.subr.mxu0 0.0
    %1591 = vmatpush1.msra.mxu0 0.0
    %1592 = vmatprep.subr.mxu0 0.0
    %1593 = vmatpush1.msra.mxu0 0.0
    %1594 = vmatprep.subr.mxu0 0.0
    %1595 = vmatpush1.msra.mxu0 0.0
    %1596 = vmatprep.subr.mxu0 0.0
    %1597 = vmatpush1.msra.mxu0 0.0
    %1598 = vmatprep.subr.mxu0 0.0
    %1599 = vmatpush1.msra.mxu0 0.0
    %1600 = vmatprep.subr.mxu0 0.0
    %1601 = vmatpush1.msra.mxu0 0.0
    %1602 = vmatprep.subr.mxu0 0.0
    %1603 = vmatpush1.msra.mxu0 0.0
    %1604 = vmatprep.subr.mxu0 0.0
    %1605 = vmatpush1.msra.mxu0 0.0
    %1606 = vmatprep.subr.mxu0 0.0
    %1607 = vmatpush1.msra.mxu0 0.0
    %1608 = vmatprep.subr.mxu0 0.0
    %1609 = vmatpush1.msra.mxu0 0.0
    %1610 = vmatprep.subr.mxu0 0.0
    %1611 = vmatpush1.msra.mxu0 0.0
    %1612 = vmatprep.subr.mxu0 0.0
    %1613 = vmatpush1.msra.mxu0 0.0
    %1614 = vmatprep.subr.mxu0 0.0
    %1615 = vmatpush1.msra.mxu0 0.0
    %1616 = vmatprep.subr.mxu0 0.0
    %1617 = vmatpush1.msra.mxu0 0.0
    %1618 = vmatprep.subr.mxu0 0.0
    %1619 = vmatpush1.msra.mxu0 0.0
    %1620 = vmatprep.subr.mxu0 0.0
    %1621 = vmatpush1.msra.mxu0 0.0
    %1622 = vmatprep.subr.mxu0 0.0
    %1623 = vmatpush1.msra.mxu0 0.0
    %1624 = vmatprep.subr.mxu0 0.0
    %1625 = vmatpush1.msra.mxu0 0.0
    %1626 = vmatprep.subr.mxu0 0.0
    %1627 = vmatpush1.msra.mxu0 0.0
    %1628 = vmatprep.subr.mxu0 0.0
    %1629 = vmatpush1.msra.mxu0 0.0
    %1630 = vmatprep.subr.mxu0 0.0
    %1631 = vmatpush1.msra.mxu0 0.0
    %1632 = vmatprep.subr.mxu0 0.0
    %1633 = vmatpush1.msra.mxu0 0.0
    %1634 = vmatprep.subr.mxu0 0.0
    %1635 = vmatpush1.msra.mxu0 0.0
    %1636 = vmatprep.mubr.f32.mxu0 0.0
    %1637 = vmatmul.mubr.f32.gmra.mrb[0].mxu0 %v1570
    %v1638 = vpop.f32.mrb[0].mxu0
    %v1639 = vadd.f32 0.0, %v1638
    %v1640 = vpop.f32.mrb[0].mxu0
    %1641 = vdwg.mxu0
    %v1642 = vadd.f32 %v1569, %v1639
    %v1643 = vxor.u32 %v1642, 2147483648
    %v1644 = vmul.f32 %v1643, 1.442695
    %v1645 = vpow.pop %v1644
    %v1646 = vadd.f32 %v1645, 1.0
    %v1647 = vrcp.pop %v1646
    %v1648 = vmul.f32 1.0, %v1647
    %v1649 = vtanh.pop %v1642
    %v1650 = vmul.f32 %v1648, %v1557
    %1652 = vrot.lane.b32.xlu0 %v1649, 32
    %v1653 = vpop.permute.xlu0 %1652
    %v1655 = vmul.f32 %v1648, %v1653
    %1657 = vrot.lane.b32.xlu0 %v1655, 32
    %v1658 = vpop.permute.xlu0 %1657
    %v1660 = vadd.f32 %v1650, %v1658
    %v1661 = vtanh.pop %v1660
    %1663 = vrot.lane.b32.xlu0 %v1661, 32
    %v1664 = vpop.permute.xlu0 %1663
    %v1666 = vmul.f32 %v1648, %v1664
    %1668 = vrot.lane.b32.xlu0 %v1666, 64
    %v1669 = vpop.permute.xlu0 %1668
    %1671 = vst.msk [vmem:[#allocation3 + $0x18] sm:$0xff] %vm254, %v1669
    %v1672 = vld [vmem:[#allocation2 + $0x20] sm:$0xff]
    %v1673 = vsel %vm254, %v1669, 0
    %1675 = vmatprep.subr.mxu0 0.0
    %1676 = vmatpush1.msra.mxu0 %v1092
    %1677 = vmatprep.subr.mxu0 0.0
    %1678 = vmatpush1.msra.mxu0 %v1093
    %1679 = vmatprep.subr.mxu0 0.0
    %1680 = vmatpush1.msra.mxu0 %v1094
    %1681 = vmatprep.subr.mxu0 0.0
    %1682 = vmatpush1.msra.mxu0 %v1095
    %1683 = vmatprep.subr.mxu0 0.0
    %1684 = vmatpush1.msra.mxu0 0.0
    %1685 = vmatprep.subr.mxu0 0.0
    %1686 = vmatpush1.msra.mxu0 0.0
    %1687 = vmatprep.subr.mxu0 0.0
    %1688 = vmatpush1.msra.mxu0 0.0
    %1689 = vmatprep.subr.mxu0 0.0
    %1690 = vmatpush1.msra.mxu0 0.0
    %1691 = vmatprep.subr.mxu0 0.0
    %1692 = vmatpush1.msra.mxu0 0.0
    %1693 = vmatprep.subr.mxu0 0.0
    %1694 = vmatpush1.msra.mxu0 0.0
    %1695 = vmatprep.subr.mxu0 0.0
    %1696 = vmatpush1.msra.mxu0 0.0
    %1697 = vmatprep.subr.mxu0 0.0
    %1698 = vmatpush1.msra.mxu0 0.0
    %1699 = vmatprep.subr.mxu0 0.0
    %1700 = vmatpush1.msra.mxu0 0.0
    %1701 = vmatprep.subr.mxu0 0.0
    %1702 = vmatpush1.msra.mxu0 0.0
    %1703 = vmatprep.subr.mxu0 0.0
    %1704 = vmatpush1.msra.mxu0 0.0
    %1705 = vmatprep.subr.mxu0 0.0
    %1706 = vmatpush1.msra.mxu0 0.0
    %1707 = vmatprep.subr.mxu0 0.0
    %1708 = vmatpush1.msra.mxu0 0.0
    %1709 = vmatprep.subr.mxu0 0.0
    %1710 = vmatpush1.msra.mxu0 0.0
    %1711 = vmatprep.subr.mxu0 0.0
    %1712 = vmatpush1.msra.mxu0 0.0
    %1713 = vmatprep.subr.mxu0 0.0
    %1714 = vmatpush1.msra.mxu0 0.0
    %1715 = vmatprep.subr.mxu0 0.0
    %1716 = vmatpush1.msra.mxu0 0.0
    %1717 = vmatprep.subr.mxu0 0.0
    %1718 = vmatpush1.msra.mxu0 0.0
    %1719 = vmatprep.subr.mxu0 0.0
    %1720 = vmatpush1.msra.mxu0 0.0
    %1721 = vmatprep.subr.mxu0 0.0
    %1722 = vmatpush1.msra.mxu0 0.0
    %1723 = vmatprep.subr.mxu0 0.0
    %1724 = vmatpush1.msra.mxu0 0.0
    %1725 = vmatprep.subr.mxu0 0.0
    %1726 = vmatpush1.msra.mxu0 0.0
    %1727 = vmatprep.subr.mxu0 0.0
    %1728 = vmatpush1.msra.mxu0 0.0
    %1729 = vmatprep.subr.mxu0 0.0
    %1730 = vmatpush1.msra.mxu0 0.0
    %1731 = vmatprep.subr.mxu0 0.0
    %1732 = vmatpush1.msra.mxu0 0.0
    %1733 = vmatprep.subr.mxu0 0.0
    %1734 = vmatpush1.msra.mxu0 0.0
    %1735 = vmatprep.subr.mxu0 0.0
    %1736 = vmatpush1.msra.mxu0 0.0
    %1737 = vmatprep.subr.mxu0 0.0
    %1738 = vmatpush1.msra.mxu0 0.0
    %1739 = vmatprep.mubr.f32.mxu0 0.0
    %1740 = vmatmul.mubr.f32.gmra.mrb[0].mxu0 %v1673
    %v1741 = vpop.f32.mrb[0].mxu0
    %v1742 = vadd.f32 0.0, %v1741
    %v1743 = vpop.f32.mrb[0].mxu0
    %1744 = vdwg.mxu0
    %v1745 = vadd.f32 %v1672, %v1742
    %v1746 = vxor.u32 %v1745, 2147483648
    %v1747 = vmul.f32 %v1746, 1.442695
    %v1748 = vpow.pop %v1747
    %v1749 = vadd.f32 %v1748, 1.0
    %v1750 = vrcp.pop %v1749
    %v1751 = vmul.f32 1.0, %v1750
    %v1752 = vtanh.pop %v1745
    %v1753 = vmul.f32 %v1751, %v1660
    %1755 = vrot.lane.b32.xlu0 %v1752, 32
    %v1756 = vpop.permute.xlu0 %1755
    %v1758 = vmul.f32 %v1751, %v1756
    %1760 = vrot.lane.b32.xlu0 %v1758, 32
    %v1761 = vpop.permute.xlu0 %1760
    %v1763 = vadd.f32 %v1753, %v1761
    %v1764 = vtanh.pop %v1763
    %1766 = vrot.lane.b32.xlu0 %v1764, 32
    %v1767 = vpop.permute.xlu0 %1766
    %v1769 = vmul.f32 %v1751, %v1767
    %1771 = vrot.lane.b32.xlu0 %v1769, 64
    %v1772 = vpop.permute.xlu0 %1771
    %1774 = vst.msk [vmem:[#allocation3 + $0x20] sm:$0xff] %vm254, %v1772
    %v1775 = vld [vmem:[#allocation2 + $0x28] sm:$0xff]
    %v1776 = vsel %vm254, %v1772, 0
    %1778 = vmatprep.subr.mxu0 0.0
    %1779 = vmatpush1.msra.mxu0 %v1092
    %1780 = vmatprep.subr.mxu0 0.0
    %1781 = vmatpush1.msra.mxu0 %v1093
    %1782 = vmatprep.subr.mxu0 0.0
    %1783 = vmatpush1.msra.mxu0 %v1094
    %1784 = vmatprep.subr.mxu0 0.0
    %1785 = vmatpush1.msra.mxu0 %v1095
    %1786 = vmatprep.subr.mxu0 0.0
    %1787 = vmatpush1.msra.mxu0 0.0
    %1788 = vmatprep.subr.mxu0 0.0
    %1789 = vmatpush1.msra.mxu0 0.0
    %1790 = vmatprep.subr.mxu0 0.0
    %1791 = vmatpush1.msra.mxu0 0.0
    %1792 = vmatprep.subr.mxu0 0.0
    %1793 = vmatpush1.msra.mxu0 0.0
    %1794 = vmatprep.subr.mxu0 0.0
    %1795 = vmatpush1.msra.mxu0 0.0
    %1796 = vmatprep.subr.mxu0 0.0
    %1797 = vmatpush1.msra.mxu0 0.0
    %1798 = vmatprep.subr.mxu0 0.0
    %1799 = vmatpush1.msra.mxu0 0.0
    %1800 = vmatprep.subr.mxu0 0.0
    %1801 = vmatpush1.msra.mxu0 0.0
    %1802 = vmatprep.subr.mxu0 0.0
    %1803 = vmatpush1.msra.mxu0 0.0
    %1804 = vmatprep.subr.mxu0 0.0
    %1805 = vmatpush1.msra.mxu0 0.0
    %1806 = vmatprep.subr.mxu0 0.0
    %1807 = vmatpush1.msra.mxu0 0.0
    %1808 = vmatprep.subr.mxu0 0.0
    %1809 = vmatpush1.msra.mxu0 0.0
    %1810 = vmatprep.subr.mxu0 0.0
    %1811 = vmatpush1.msra.mxu0 0.0
    %1812 = vmatprep.subr.mxu0 0.0
    %1813 = vmatpush1.msra.mxu0 0.0
    %1814 = vmatprep.subr.mxu0 0.0
    %1815 = vmatpush1.msra.mxu0 0.0
    %1816 = vmatprep.subr.mxu0 0.0
    %1817 = vmatpush1.msra.mxu0 0.0
    %1818 = vmatprep.subr.mxu0 0.0
    %1819 = vmatpush1.msra.mxu0 0.0
    %1820 = vmatprep.subr.mxu0 0.0
    %1821 = vmatpush1.msra.mxu0 0.0
    %1822 = vmatprep.subr.mxu0 0.0
    %1823 = vmatpush1.msra.mxu0 0.0
    %1824 = vmatprep.subr.mxu0 0.0
    %1825 = vmatpush1.msra.mxu0 0.0
    %1826 = vmatprep.subr.mxu0 0.0
    %1827 = vmatpush1.msra.mxu0 0.0
    %1828 = vmatprep.subr.mxu0 0.0
    %1829 = vmatpush1.msra.mxu0 0.0
    %1830 = vmatprep.subr.mxu0 0.0
    %1831 = vmatpush1.msra.mxu0 0.0
    %1832 = vmatprep.subr.mxu0 0.0
    %1833 = vmatpush1.msra.mxu0 0.0
    %1834 = vmatprep.subr.mxu0 0.0
    %1835 = vmatpush1.msra.mxu0 0.0
    %1836 = vmatprep.subr.mxu0 0.0
    %1837 = vmatpush1.msra.mxu0 0.0
    %1838 = vmatprep.subr.mxu0 0.0
    %1839 = vmatpush1.msra.mxu0 0.0
    %1840 = vmatprep.subr.mxu0 0.0
    %1841 = vmatpush1.msra.mxu0 0.0
    %1842 = vmatprep.mubr.f32.mxu0 0.0
    %1843 = vmatmul.mubr.f32.gmra.mrb[0].mxu0 %v1776
    %v1844 = vpop.f32.mrb[0].mxu0
    %v1845 = vadd.f32 0.0, %v1844
    %v1846 = vpop.f32.mrb[0].mxu0
    %1847 = vdwg.mxu0
    %v1848 = vadd.f32 %v1775, %v1845
    %v1849 = vxor.u32 %v1848, 2147483648
    %v1850 = vmul.f32 %v1849, 1.442695
    %v1851 = vpow.pop %v1850
    %v1852 = vadd.f32 %v1851, 1.0
    %v1853 = vrcp.pop %v1852
    %v1854 = vmul.f32 1.0, %v1853
    %v1855 = vtanh.pop %v1848
    %v1856 = vmul.f32 %v1854, %v1763
    %1858 = vrot.lane.b32.xlu0 %v1855, 32
    %v1859 = vpop.permute.xlu0 %1858
    %v1861 = vmul.f32 %v1854, %v1859
    %1863 = vrot.lane.b32.xlu0 %v1861, 32
    %v1864 = vpop.permute.xlu0 %1863
    %v1866 = vadd.f32 %v1856, %v1864
    %v1867 = vtanh.pop %v1866
    %1869 = vrot.lane.b32.xlu0 %v1867, 32
    %v1870 = vpop.permute.xlu0 %1869
    %v1872 = vmul.f32 %v1854, %v1870
    %1874 = vrot.lane.b32.xlu0 %v1872, 64
    %v1875 = vpop.permute.xlu0 %1874
    %1877 = vst.msk [vmem:[#allocation3 + $0x28] sm:$0xff] %vm254, %v1875
    %v1878 = vld [vmem:[#allocation2 + $0x30] sm:$0xff]
    %v1879 = vsel %vm254, %v1875, 0
    %1881 = vmatprep.subr.mxu0 0.0
    %1882 = vmatpush1.msra.mxu0 %v1092
    %1883 = vmatprep.subr.mxu0 0.0
    %1884 = vmatpush1.msra.mxu0 %v1093
    %1885 = vmatprep.subr.mxu0 0.0
    %1886 = vmatpush1.msra.mxu0 %v1094
    %1887 = vmatprep.subr.mxu0 0.0
    %1888 = vmatpush1.msra.mxu0 %v1095
    %1889 = vmatprep.subr.mxu0 0.0
    %1890 = vmatpush1.msra.mxu0 0.0
    %1891 = vmatprep.subr.mxu0 0.0
    %1892 = vmatpush1.msra.mxu0 0.0
    %1893 = vmatprep.subr.mxu0 0.0
    %1894 = vmatpush1.msra.mxu0 0.0
    %1895 = vmatprep.subr.mxu0 0.0
    %1896 = vmatpush1.msra.mxu0 0.0
    %1897 = vmatprep.subr.mxu0 0.0
    %1898 = vmatpush1.msra.mxu0 0.0
    %1899 = vmatprep.subr.mxu0 0.0
    %1900 = vmatpush1.msra.mxu0 0.0
    %1901 = vmatprep.subr.mxu0 0.0
    %1902 = vmatpush1.msra.mxu0 0.0
    %1903 = vmatprep.subr.mxu0 0.0
    %1904 = vmatpush1.msra.mxu0 0.0
    %1905 = vmatprep.subr.mxu0 0.0
    %1906 = vmatpush1.msra.mxu0 0.0
    %1907 = vmatprep.subr.mxu0 0.0
    %1908 = vmatpush1.msra.mxu0 0.0
    %1909 = vmatprep.subr.mxu0 0.0
    %1910 = vmatpush1.msra.mxu0 0.0
    %1911 = vmatprep.subr.mxu0 0.0
    %1912 = vmatpush1.msra.mxu0 0.0
    %1913 = vmatprep.subr.mxu0 0.0
    %1914 = vmatpush1.msra.mxu0 0.0
    %1915 = vmatprep.subr.mxu0 0.0
    %1916 = vmatpush1.msra.mxu0 0.0
    %1917 = vmatprep.subr.mxu0 0.0
    %1918 = vmatpush1.msra.mxu0 0.0
    %1919 = vmatprep.subr.mxu0 0.0
    %1920 = vmatpush1.msra.mxu0 0.0
    %1921 = vmatprep.subr.mxu0 0.0
    %1922 = vmatpush1.msra.mxu0 0.0
    %1923 = vmatprep.subr.mxu0 0.0
    %1924 = vmatpush1.msra.mxu0 0.0
    %1925 = vmatprep.subr.mxu0 0.0
    %1926 = vmatpush1.msra.mxu0 0.0
    %1927 = vmatprep.subr.mxu0 0.0
    %1928 = vmatpush1.msra.mxu0 0.0
    %1929 = vmatprep.subr.mxu0 0.0
    %1930 = vmatpush1.msra.mxu0 0.0
    %1931 = vmatprep.subr.mxu0 0.0
    %1932 = vmatpush1.msra.mxu0 0.0
    %1933 = vmatprep.subr.mxu0 0.0
    %1934 = vmatpush1.msra.mxu0 0.0
    %1935 = vmatprep.subr.mxu0 0.0
    %1936 = vmatpush1.msra.mxu0 0.0
    %1937 = vmatprep.subr.mxu0 0.0
    %1938 = vmatpush1.msra.mxu0 0.0
    %1939 = vmatprep.subr.mxu0 0.0
    %1940 = vmatpush1.msra.mxu0 0.0
    %1941 = vmatprep.subr.mxu0 0.0
    %1942 = vmatpush1.msra.mxu0 0.0
    %1943 = vmatprep.subr.mxu0 0.0
    %1944 = vmatpush1.msra.mxu0 0.0
    %1945 = vmatprep.mubr.f32.mxu0 0.0
    %1946 = vmatmul.mubr.f32.gmra.mrb[0].mxu0 %v1879
    %v1947 = vpop.f32.mrb[0].mxu0
    %v1948 = vadd.f32 0.0, %v1947
    %v1949 = vpop.f32.mrb[0].mxu0
    %1950 = vdwg.mxu0
    %v1951 = vadd.f32 %v1878, %v1948
    %v1952 = vxor.u32 %v1951, 2147483648
    %v1953 = vmul.f32 %v1952, 1.442695
    %v1954 = vpow.pop %v1953
    %v1955 = vadd.f32 %v1954, 1.0
    %v1956 = vrcp.pop %v1955
    %v1957 = vmul.f32 1.0, %v1956
    %v1958 = vtanh.pop %v1951
    %v1959 = vmul.f32 %v1957, %v1866
    %1961 = vrot.lane.b32.xlu0 %v1958, 32
    %v1962 = vpop.permute.xlu0 %1961
    %v1964 = vmul.f32 %v1957, %v1962
    %1966 = vrot.lane.b32.xlu0 %v1964, 32
    %v1967 = vpop.permute.xlu0 %1966
    %v1969 = vadd.f32 %v1959, %v1967
    %v1970 = vtanh.pop %v1969
    %1972 = vrot.lane.b32.xlu0 %v1970, 32
    %v1973 = vpop.permute.xlu0 %1972
    %v1975 = vmul.f32 %v1957, %v1973
    %1977 = vrot.lane.b32.xlu0 %v1975, 64
    %v1978 = vpop.permute.xlu0 %1977
    %1980 = vst.msk [vmem:[#allocation3 + $0x30] sm:$0xff] %vm254, %v1978
    %v1981 = vld [vmem:[#allocation2 + $0x38] sm:$0xff]
    %v1982 = vsel %vm254, %v1978, 0
    %1984 = vmatprep.subr.mxu0 0.0
    %1985 = vmatpush1.msra.mxu0 %v1092
    %1986 = vmatprep.subr.mxu0 0.0
    %1987 = vmatpush1.msra.mxu0 %v1093
    %1988 = vmatprep.subr.mxu0 0.0
    %1989 = vmatpush1.msra.mxu0 %v1094
    %1990 = vmatprep.subr.mxu0 0.0
    %1991 = vmatpush1.msra.mxu0 %v1095
    %1992 = vmatprep.subr.mxu0 0.0
    %1993 = vmatpush1.msra.mxu0 0.0
    %1994 = vmatprep.subr.mxu0 0.0
    %1995 = vmatpush1.msra.mxu0 0.0
    %1996 = vmatprep.subr.mxu0 0.0
    %1997 = vmatpush1.msra.mxu0 0.0
    %1998 = vmatprep.subr.mxu0 0.0
    %1999 = vmatpush1.msra.mxu0 0.0
    %2000 = vmatprep.subr.mxu0 0.0
    %2001 = vmatpush1.msra.mxu0 0.0
    %2002 = vmatprep.subr.mxu0 0.0
    %2003 = vmatpush1.msra.mxu0 0.0
    %2004 = vmatprep.subr.mxu0 0.0
    %2005 = vmatpush1.msra.mxu0 0.0
    %2006 = vmatprep.subr.mxu0 0.0
    %2007 = vmatpush1.msra.mxu0 0.0
    %2008 = vmatprep.subr.mxu0 0.0
    %2009 = vmatpush1.msra.mxu0 0.0
    %2010 = vmatprep.subr.mxu0 0.0
    %2011 = vmatpush1.msra.mxu0 0.0
    %2012 = vmatprep.subr.mxu0 0.0
    %2013 = vmatpush1.msra.mxu0 0.0
    %2014 = vmatprep.subr.mxu0 0.0
    %2015 = vmatpush1.msra.mxu0 0.0
    %2016 = vmatprep.subr.mxu0 0.0
    %2017 = vmatpush1.msra.mxu0 0.0
    %2018 = vmatprep.subr.mxu0 0.0
    %2019 = vmatpush1.msra.mxu0 0.0
    %2020 = vmatprep.subr.mxu0 0.0
    %2021 = vmatpush1.msra.mxu0 0.0
    %2022 = vmatprep.subr.mxu0 0.0
    %2023 = vmatpush1.msra.mxu0 0.0
    %2024 = vmatprep.subr.mxu0 0.0
    %2025 = vmatpush1.msra.mxu0 0.0
    %2026 = vmatprep.subr.mxu0 0.0
    %2027 = vmatpush1.msra.mxu0 0.0
    %2028 = vmatprep.subr.mxu0 0.0
    %2029 = vmatpush1.msra.mxu0 0.0
    %2030 = vmatprep.subr.mxu0 0.0
    %2031 = vmatpush1.msra.mxu0 0.0
    %2032 = vmatprep.subr.mxu0 0.0
    %2033 = vmatpush1.msra.mxu0 0.0
    %2034 = vmatprep.subr.mxu0 0.0
    %2035 = vmatpush1.msra.mxu0 0.0
    %2036 = vmatprep.subr.mxu0 0.0
    %2037 = vmatpush1.msra.mxu0 0.0
    %2038 = vmatprep.subr.mxu0 0.0
    %2039 = vmatpush1.msra.mxu0 0.0
    %2040 = vmatprep.subr.mxu0 0.0
    %2041 = vmatpush1.msra.mxu0 0.0
    %2042 = vmatprep.subr.mxu0 0.0
    %2043 = vmatpush1.msra.mxu0 0.0
    %2044 = vmatprep.subr.mxu0 0.0
    %2045 = vmatpush1.msra.mxu0 0.0
    %2046 = vmatprep.subr.mxu0 0.0
    %2047 = vmatpush1.msra.mxu0 0.0
    %2048 = vmatprep.mubr.f32.mxu0 0.0
    %2049 = vmatmul.mubr.f32.gmra.mrb[0].mxu0 %v1982
    %v2050 = vpop.f32.mrb[0].mxu0
    %v2051 = vadd.f32 0.0, %v2050
    %v2052 = vpop.f32.mrb[0].mxu0
    %2053 = vdwg.mxu0
    %v2054 = vadd.f32 %v1981, %v2051
    %v2055 = vxor.u32 %v2054, 2147483648
    %v2056 = vmul.f32 %v2055, 1.442695
    %v2057 = vpow.pop %v2056
    %v2058 = vadd.f32 %v2057, 1.0
    %v2059 = vrcp.pop %v2058
    %v2060 = vmul.f32 1.0, %v2059
    %v2061 = vtanh.pop %v2054
    %v2062 = vmul.f32 %v2060, %v1969
    %2064 = vrot.lane.b32.xlu0 %v2061, 32
    %v2065 = vpop.permute.xlu0 %2064
    %v2067 = vmul.f32 %v2060, %v2065
    %2069 = vrot.lane.b32.xlu0 %v2067, 32
    %v2070 = vpop.permute.xlu0 %2069
    %v2072 = vadd.f32 %v2062, %v2070
    %v2073 = vtanh.pop %v2072
    %2075 = vrot.lane.b32.xlu0 %v2073, 32
    %v2076 = vpop.permute.xlu0 %2075
    %v2078 = vmul.f32 %v2060, %v2076
    %2080 = vrot.lane.b32.xlu0 %v2078, 64
    %v2081 = vpop.permute.xlu0 %2080
    %2083 = vst.msk [vmem:[#allocation3 + $0x38] sm:$0xff] %vm254, %v2081
    %s2084 = scalar_lea.vmem [#allocation13], 8
    %2085 = vst.msk [vmem:[%s2084] sm:$0xff] %vm254, %v2081
    %2087 = vrot.lane.b32.xlu0 %v2072, 96
    %v2088 = vpop.permute.xlu0 %2087
    %s2090 = scalar_lea.vmem [#allocation15], 8
    %2091 = vst.msk [vmem:[%s2090] sm:$0xff] %vm254, %v2088
    %v2092 = vld [vmem:[#allocation3] sm:$0xff]
    %v2093 = vld [vmem:[#allocation3 + $0x8] sm:$0xff]
    %v2094 = vld [vmem:[#allocation3 + $0x10] sm:$0xff]
    %v2095 = vld [vmem:[#allocation3 + $0x18] sm:$0xff]
    %v2096 = vld [vmem:[#allocation3 + $0x20] sm:$0xff]
    %v2097 = vld [vmem:[#allocation3 + $0x28] sm:$0xff]
    %v2098 = vld [vmem:[#allocation3 + $0x30] sm:$0xff]
    %v2099 = vld [vmem:[#allocation3 + $0x38] sm:$0xff]
    %v2100 = vld [vmem:[#allocation10] sm:$0xff]
    %v2101 = vld [vmem:[#allocation10 + $0x8] sm:$0xff]
    %v2102 = vld [vmem:[#allocation10 + $0x10] sm:$0xff]
    %v2103 = vld [vmem:[#allocation10 + $0x18] sm:$0xff]
    %v2104 = vld [vmem:[%s8] sm:$0x1]
    %v2106 = vlaneseq
    %v2107 = vshrl.u32 %v2106, 7
    %v2108 = vsub.s32 0, %v2107
    %v2109 = vrot.slane %v2104, %v2108
    %v2112 = vsel %vm254, %v2092, 0
    %v2115 = vsel %vm254, %v2093, 0
    %v2118 = vsel %vm254, %v2094, 0
    %v2121 = vsel %vm254, %v2095, 0
    %v2124 = vsel %vm254, %v2096, 0
    %v2127 = vsel %vm254, %v2097, 0
    %v2130 = vsel %vm254, %v2098, 0
    %v2133 = vsel %vm254, %v2099, 0
    %2135 = vmatprep.subr.mxu0 0.0
    %2136 = vmatpush1.msra.mxu0 %v2100
    %2137 = vmatprep.subr.mxu0 0.0
    %2138 = vmatpush1.msra.mxu0 %v2101
    %2139 = vmatprep.subr.mxu0 0.0
    %2140 = vmatpush1.msra.mxu0 %v2102
    %2141 = vmatprep.subr.mxu0 0.0
    %2142 = vmatpush1.msra.mxu0 %v2103
    %2143 = vmatprep.subr.mxu0 0.0
    %2144 = vmatpush1.msra.mxu0 0.0
    %2145 = vmatprep.subr.mxu0 0.0
    %2146 = vmatpush1.msra.mxu0 0.0
    %2147 = vmatprep.subr.mxu0 0.0
    %2148 = vmatpush1.msra.mxu0 0.0
    %2149 = vmatprep.subr.mxu0 0.0
    %2150 = vmatpush1.msra.mxu0 0.0
    %2151 = vmatprep.subr.mxu0 0.0
    %2152 = vmatpush1.msra.mxu0 0.0
    %2153 = vmatprep.subr.mxu0 0.0
    %2154 = vmatpush1.msra.mxu0 0.0
    %2155 = vmatprep.subr.mxu0 0.0
    %2156 = vmatpush1.msra.mxu0 0.0
    %2157 = vmatprep.subr.mxu0 0.0
    %2158 = vmatpush1.msra.mxu0 0.0
    %2159 = vmatprep.subr.mxu0 0.0
    %2160 = vmatpush1.msra.mxu0 0.0
    %2161 = vmatprep.subr.mxu0 0.0
    %2162 = vmatpush1.msra.mxu0 0.0
    %2163 = vmatprep.subr.mxu0 0.0
    %2164 = vmatpush1.msra.mxu0 0.0
    %2165 = vmatprep.subr.mxu0 0.0
    %2166 = vmatpush1.msra.mxu0 0.0
    %2167 = vmatprep.subr.mxu0 0.0
    %2168 = vmatpush1.msra.mxu0 0.0
    %2169 = vmatprep.subr.mxu0 0.0
    %2170 = vmatpush1.msra.mxu0 0.0
    %2171 = vmatprep.subr.mxu0 0.0
    %2172 = vmatpush1.msra.mxu0 0.0
    %2173 = vmatprep.subr.mxu0 0.0
    %2174 = vmatpush1.msra.mxu0 0.0
    %2175 = vmatprep.subr.mxu0 0.0
    %2176 = vmatpush1.msra.mxu0 0.0
    %2177 = vmatprep.subr.mxu0 0.0
    %2178 = vmatpush1.msra.mxu0 0.0
    %2179 = vmatprep.subr.mxu0 0.0
    %2180 = vmatpush1.msra.mxu0 0.0
    %2181 = vmatprep.subr.mxu0 0.0
    %2182 = vmatpush1.msra.mxu0 0.0
    %2183 = vmatprep.subr.mxu0 0.0
    %2184 = vmatpush1.msra.mxu0 0.0
    %2185 = vmatprep.subr.mxu0 0.0
    %2186 = vmatpush1.msra.mxu0 0.0
    %2187 = vmatprep.subr.mxu0 0.0
    %2188 = vmatpush1.msra.mxu0 0.0
    %2189 = vmatprep.subr.mxu0 0.0
    %2190 = vmatpush1.msra.mxu0 0.0
    %2191 = vmatprep.subr.mxu0 0.0
    %2192 = vmatpush1.msra.mxu0 0.0
    %2193 = vmatprep.subr.mxu0 0.0
    %2194 = vmatpush1.msra.mxu0 0.0
    %2195 = vmatprep.subr.mxu0 0.0
    %2196 = vmatpush1.msra.mxu0 0.0
    %2197 = vmatprep.subr.mxu0 0.0
    %2198 = vmatpush1.msra.mxu0 0.0
    %2199 = vmatprep.mubr.f32.mxu0 0.0
    %2200 = vmatmul.mubr.f32.gmra.mrb[0].mxu0 %v2112
    %v2201 = vpop.f32.mrb[0].mxu0
    %v2202 = vadd.f32 %v2109, %v2201
    %v2203 = vpop.f32.mrb[0].mxu0
    %2204 = vmatprep.mubr.f32.mxu0 0.0
    %2205 = vmatmul.mubr.f32.gmra.mrb[0].mxu0 %v2115
    %v2206 = vpop.f32.mrb[0].mxu0
    %v2207 = vadd.f32 %v2109, %v2206
    %v2208 = vpop.f32.mrb[0].mxu0
    %2209 = vmatprep.mubr.f32.mxu0 0.0
    %2210 = vmatmul.mubr.f32.gmra.mrb[0].mxu0 %v2118
    %v2211 = vpop.f32.mrb[0].mxu0
    %v2212 = vadd.f32 %v2109, %v2211
    %v2213 = vpop.f32.mrb[0].mxu0
    %2214 = vmatprep.mubr.f32.mxu0 0.0
    %2215 = vmatmul.mubr.f32.gmra.mrb[0].mxu0 %v2121
    %v2216 = vpop.f32.mrb[0].mxu0
    %v2217 = vadd.f32 %v2109, %v2216
    %v2218 = vpop.f32.mrb[0].mxu0
    %2219 = vmatprep.mubr.f32.mxu0 0.0
    %2220 = vmatmul.mubr.f32.gmra.mrb[0].mxu0 %v2124
    %v2221 = vpop.f32.mrb[0].mxu0
    %v2222 = vadd.f32 %v2109, %v2221
    %v2223 = vpop.f32.mrb[0].mxu0
    %2224 = vmatprep.mubr.f32.mxu0 0.0
    %2225 = vmatmul.mubr.f32.gmra.mrb[0].mxu0 %v2127
    %v2226 = vpop.f32.mrb[0].mxu0
    %v2227 = vadd.f32 %v2109, %v2226
    %v2228 = vpop.f32.mrb[0].mxu0
    %2229 = vmatprep.mubr.f32.mxu0 0.0
    %2230 = vmatmul.mubr.f32.gmra.mrb[0].mxu0 %v2130
    %v2231 = vpop.f32.mrb[0].mxu0
    %v2232 = vadd.f32 %v2109, %v2231
    %v2233 = vpop.f32.mrb[0].mxu0
    %2234 = vmatprep.mubr.f32.mxu0 0.0
    %2235 = vmatmul.mubr.f32.gmra.mrb[0].mxu0 %v2133
    %v2236 = vpop.f32.mrb[0].mxu0
    %v2237 = vadd.f32 %v2109, %v2236
    %v2238 = vpop.f32.mrb[0].mxu0
    %2239 = vdwg.mxu0
    %2240 = vst [vmem:[#allocation12] sm:$0xff] %v2202
    %2241 = vst [vmem:[#allocation12 + $0x8] sm:$0xff] %v2207
    %2242 = vst [vmem:[#allocation12 + $0x10] sm:$0xff] %v2212
    %2243 = vst [vmem:[#allocation12 + $0x18] sm:$0xff] %v2217
    %2244 = vst [vmem:[#allocation12 + $0x20] sm:$0xff] %v2222
    %2245 = vst [vmem:[#allocation12 + $0x28] sm:$0xff] %v2227
    %2246 = vst [vmem:[#allocation12 + $0x30] sm:$0xff] %v2232
    %2247 = vst [vmem:[#allocation12 + $0x38] sm:$0xff] %v2237
    // Predicated region
    $region54: #{tpu_custom_call.1} parent=1 // pred_check
      _
    $region55: #{tpu_custom_call.1} parent=1 // pred_check_branch
      %2249 = sbr.rel (0) target = $region57
    $region56: #{tpu_custom_call.1} parent=1 // pred_region
      %s2251 = ssub.s32 1024, 1024
      %2252 = vsyncadd [#allocation6], %s2251
      %s2253 = sshll.u32 [#allocation12], 4
      %s2254 = int_to_ptr.vmem [resolvable:$true] %s2253
      %2259 = dma.vmem_to_hbm [thread:$0]  %s2254, 1024, %s9, [#allocation6], 128, 128, 8
    $region57: #{tpu_custom_call.1} parent=1 // pred_fallthru
      _
    // Predicated region
    $region58: #{tpu_custom_call.1} parent=1 // pred_check
      _
    $region59: #{tpu_custom_call.1} parent=1 // pred_check_branch
      %2261 = sbr.rel (0) target = $region61
    $region60: #{tpu_custom_call.1} parent=1 // pred_region
      %s2263 = ssub.s32 256, 256
      %2264 = vsyncadd [#allocation14], %s2263
      %s2265 = sshll.u32 [#allocation13], 4
      %s2266 = int_to_ptr.vmem [resolvable:$true] %s2265
      %2271 = dma.vmem_to_hbm [thread:$0]  %s2266, 256, %s10, [#allocation14], 128, 128, 8
    $region61: #{tpu_custom_call.1} parent=1 // pred_fallthru
      _
    // Predicated region
    $region62: #{tpu_custom_call.1} parent=1 // pred_check
      _
    $region63: #{tpu_custom_call.1} parent=1 // pred_check_branch
      %2273 = sbr.rel (0) target = $region65
    $region64: #{tpu_custom_call.1} parent=1 // pred_region
      %s2275 = ssub.s32 256, 256
      %2276 = vsyncadd [#allocation14], %s2275
      %s2277 = sshll.u32 [#allocation15], 4
      %s2278 = int_to_ptr.vmem [resolvable:$true] %s2277
      %2283 = dma.vmem_to_hbm [thread:$0]  %s2278, 256, %s11, [#allocation14], 128, 128, 8
    $region65: #{tpu_custom_call.1} parent=1 // pred_fallthru
      _
    // Predicated region
    $region66: #{tpu_custom_call.1} parent=1 // pred_check
      _
    $region67: #{tpu_custom_call.1} parent=1 // pred_check_branch
      %2285 = sbr.rel (0) target = $region69
    $region68: #{tpu_custom_call.1} parent=1 // pred_region
      %2286 = dma.done [#allocation6], 1024
    $region69: #{tpu_custom_call.1} parent=1 // pred_fallthru
      _
    // Predicated region
    $region70: #{tpu_custom_call.1} parent=1 // pred_check
      _
    $region71: #{tpu_custom_call.1} parent=1 // pred_check_branch
      %2288 = sbr.rel (0) target = $region73
    $region72: #{tpu_custom_call.1} parent=1 // pred_region
      %2289 = dma.done [#allocation14], 256
    $region73: #{tpu_custom_call.1} parent=1 // pred_fallthru
      _
    // Predicated region
    $region74: #{tpu_custom_call.1} parent=1 // pred_check
      _
    $region75: #{tpu_custom_call.1} parent=1 // pred_check_branch
      %2291 = sbr.rel (0) target = $region77
    $region76: #{tpu_custom_call.1} parent=1 // pred_region
      %2292 = dma.done [#allocation14], 256
    $region77: #{tpu_custom_call.1} parent=1 // pred_fallthru
      _
    %2293 = vsyncpa [#allocation5], 1
    %2294 = vsyncpa [#allocation8], 1
    %2295 = vsyncpa [#allocation11], 1
    %2296 = vsyncpa [#allocation6], 1
    %2297 = vsyncpa [#allocation14], 1

</llo_original>
